<compile_context>
chip_gen: v6e
topology: v6e:2x2x1
jax: 0.10.0
libtpu: 0.0.40
codegen_flags: <defaults>
</compile_context>

<pallas_src>
import jax
import jax.numpy as jnp
from jax.experimental import pallas as pl
from jax.experimental.pallas import tpu as pltpu


def _round_up(x, m):
    return ((x + m - 1) // m) * m


def _span_encoder_kernel(x_ref,
                         w01_ref, b01_ref,
                         w2_ref, b2_ref,
                         w3_ref, b3_ref,
                         o_ref):
    """Fused 3-matmul MLP on one row tile (layer0 pre-fused into layer1)."""
    # fused layer0+layer1: ReLU(x @ W01 + b01)
    h = jnp.dot(x_ref[...], w01_ref[...],
                preferred_element_type=jnp.float32) + b01_ref[...]
    h = jnp.maximum(h, 0.0).astype(jnp.bfloat16)

    # span[1]: ReLU(h @ W2 + b2)
    h = jnp.dot(h, w2_ref[...],
                preferred_element_type=jnp.float32) + b2_ref[...]
    h = jnp.maximum(h, 0.0).astype(jnp.bfloat16)

    # span[2]: ReLU(h @ W3 + b3)
    h = jnp.dot(h, w3_ref[...],
                preferred_element_type=jnp.float32) + b3_ref[...]
    h = jnp.maximum(h, 0.0)

    o_ref[...] = h.astype(o_ref.dtype)


def span_encoder_forward(x, prepared, *, tm=256, out_dtype=None):
    """x: [N, embed_dim] float32. prepared: fused/bf16 params (see prepare_params)."""
    n, embed_dim = x.shape
    w01, b01 = prepared["w01"], prepared["b01"]
    w2, b2 = prepared["w2"], prepared["b2"]
    w3, b3 = prepared["w3"], prepared["b3"]
    out_feature = w3.shape[1]
    out_dtype = out_dtype or x.dtype

    # Adaptive row tile: never larger than the (8-aligned) row count, always a
    # multiple of 8.  Rows are zero-padded up to a multiple of the tile and the
    # padded rows are sliced off at the end.
    tm_eff = min(tm, _round_up(n, 8))
    n_pad = _round_up(n, tm_eff)

    x_bf = x.astype(jnp.bfloat16)
    if n_pad != n:
        x_bf = jnp.pad(x_bf, ((0, n_pad - n), (0, 0)))

    grid = (pl.cdiv(n_pad, tm_eff),)

    def whole(arr):
        # Whole-array resident block (weights/biases stay in VMEM across tiles).
        return pl.BlockSpec(arr.shape, lambda i: (0, 0))

    grid_spec = pltpu.PrefetchScalarGridSpec(
        num_scalar_prefetch=0,
        grid=grid,
        in_specs=[
            pl.BlockSpec((tm_eff, embed_dim), lambda i: (i, 0)),
            whole(w01), whole(b01),
            whole(w2), whole(b2),
            whole(w3), whole(b3),
        ],
        out_specs=pl.BlockSpec((tm_eff, out_feature), lambda i: (i, 0)),
    )

    out_padded = pl.pallas_call(
        _span_encoder_kernel,
        out_shape=jax.ShapeDtypeStruct((n_pad, out_feature), out_dtype),
        grid_spec=grid_spec,
        compiler_params=pltpu.CompilerParams(
            dimension_semantics=("parallel",),
            vmem_limit_bytes=24 << 20,   # ~working set + headroom; well below v7x's 64 MiB
        ),
    )(x_bf, w01, b01, w2, b2, w3, b3)

    return out_padded[:n]


def init_params(key, embed_dim, in_feature, out_feature):
    """PyTorch-style uniform(+-1/sqrt(fan_in)) init, f32, weights stored (in, out)."""
    dims = [(embed_dim, in_feature),
            (in_feature, 512),
            (512, 1024),
            (1024, out_feature)]
    params = {}
    for idx, (fan_in, fan_out) in enumerate(dims):
        key, kw, kb = jax.random.split(key, 3)
        bound = 1.0 / (fan_in ** 0.5)
        params[f"w{idx}"] = jax.random.uniform(
            kw, (fan_in, fan_out), jnp.float32, minval=-bound, maxval=bound)
        params[f"b{idx}"] = jax.random.uniform(
            kb, (1, fan_out), jnp.float32, minval=-bound, maxval=bound)
    return params


def prepare_params(raw):
    """Fuse the activation-free first Linear into the second; cast weights to bf16.

    ReLU(W1ᵀ(W0ᵀx + b0) + b1) == ReLU(W01ᵀx + b01) with W01 = W0 @ W1,
    b01 = b0 @ W1 + b1 (fusion done in f32; biases stay f32 for the f32 add).
    """
    w01 = raw["w0"] @ raw["w1"]
    b01 = raw["b0"] @ raw["w1"] + raw["b1"]
    return {
        "w01": w01.astype(jnp.bfloat16),
        "b01": b01.astype(jnp.float32),
        "w2": raw["w2"].astype(jnp.bfloat16),
        "b2": raw["b2"].astype(jnp.float32),
        "w3": raw["w3"].astype(jnp.bfloat16),
        "b3": raw["b3"].astype(jnp.float32),
    }


def span_encoder_reference_f32(x, raw):
    """Pure-JAX f32 reference with the original (unfused) PyTorch semantics."""
    h = x @ raw["w0"] + raw["b0"]
    h = jnp.maximum(h @ raw["w1"] + raw["b1"], 0.0)
    h = jnp.maximum(h @ raw["w2"] + raw["b2"], 0.0)
    h = jnp.maximum(h @ raw["w3"] + raw["b3"], 0.0)
    return h


def span_encoder_reference_kernel_numerics(x, prepared):
    """Pure-JAX reference that mirrors the kernel's fused / bf16-operand numerics."""
    h = jnp.dot(x.astype(jnp.bfloat16), prepared["w01"],
                preferred_element_type=jnp.float32) + prepared["b01"]
    h = jnp.maximum(h, 0.0).astype(jnp.bfloat16)
    h = jnp.dot(h, prepared["w2"],
                preferred_element_type=jnp.float32) + prepared["b2"]
    h = jnp.maximum(h, 0.0).astype(jnp.bfloat16)
    h = jnp.dot(h, prepared["w3"],
                preferred_element_type=jnp.float32) + prepared["b3"]
    h = jnp.maximum(h, 0.0)
    return h.astype(x.dtype)


if __name__ == "__main__":
    embed_dim, in_feature, out_feature = 32, 64, 128
    n_rows = 50  # deliberately not 8/128-aligned to exercise padding + slicing

    key = jax.random.PRNGKey(0)
    key, kx = jax.random.split(key)
    x = jax.random.normal(kx, (n_rows, embed_dim), jnp.float32)

    raw = init_params(key, embed_dim, in_feature, out_feature)
    prepared = prepare_params(raw)

    # Default (large, adaptive) tile.
    out = jax.block_until_ready(span_encoder_forward(x, prepared))
    # Small tile to exercise a multi-step grid with row padding.
    out_small_tile = jax.block_until_ready(span_encoder_forward(x, prepared, tm=16))

    assert out.shape == (n_rows, out_feature)

    # Strict check vs. a reference with identical (fused, bf16-operand) numerics.
    ref_kernel = span_encoder_reference_kernel_numerics(x, prepared)
    assert jnp.allclose(out, ref_kernel, atol=1e-4, rtol=1e-4), \
        "mismatch vs kernel-numerics reference"
    assert jnp.allclose(out_small_tile, ref_kernel, atol=1e-4, rtol=1e-4), \
        "mismatch vs kernel-numerics reference (tm=16)"

    # Sanity check vs. the original unfused f32 PyTorch semantics (bf16 weights
    # introduce ~1% level relative deviations, so use a norm-based bound).
    ref_f32 = span_encoder_reference_f32(x, raw)
    rel_err = jnp.linalg.norm(out - ref_f32) / jnp.linalg.norm(ref_f32)
    assert rel_err < 3e-2, f"relative error vs f32 semantics too large: {rel_err}"

    print("KERNEL_OK")
</pallas_src>

<mosaic_0001>
module attributes {stable_mosaic.version = 11 : i64} {
  func.func @_span_encoder_kernel(%arg0: i32, %arg1: memref<56x32xbf16, #tpu.memory_space<vmem>>, %arg2: memref<32x512xbf16, #tpu.memory_space<vmem>>, %arg3: memref<1x512xf32, #tpu.memory_space<vmem>>, %arg4: memref<512x1024xbf16, #tpu.memory_space<vmem>>, %arg5: memref<1x1024xf32, #tpu.memory_space<vmem>>, %arg6: memref<1024x128xbf16, #tpu.memory_space<vmem>>, %arg7: memref<1x128xf32, #tpu.memory_space<vmem>>, %arg8: memref<56x128xf32, #tpu.memory_space<vmem>>) attributes {dimension_semantics = [#tpu.dimension_semantics<parallel>], iteration_bounds = array<i64: 1>, scalar_prefetch = 0 : i64, scratch_operands = 0 : i64, tpu.core_type = #tpu.core_type<tc>, window_params = [{transform_indices = @transform_0, window_bounds = array<i64: 56, 32>}, {pipeline_mode = #tpu.pipeline_mode<synchronous>, transform_indices = @transform_1, window_bounds = array<i64: 32, 512>}, {pipeline_mode = #tpu.pipeline_mode<synchronous>, transform_indices = @transform_2, window_bounds = array<i64: 1, 512>}, {pipeline_mode = #tpu.pipeline_mode<synchronous>, transform_indices = @transform_3, window_bounds = array<i64: 512, 1024>}, {pipeline_mode = #tpu.pipeline_mode<synchronous>, transform_indices = @transform_4, window_bounds = array<i64: 1, 1024>}, {pipeline_mode = #tpu.pipeline_mode<synchronous>, transform_indices = @transform_5, window_bounds = array<i64: 1024, 128>}, {pipeline_mode = #tpu.pipeline_mode<synchronous>, transform_indices = @transform_6, window_bounds = array<i64: 1, 128>}, {transform_indices = @transform_7, window_bounds = array<i64: 56, 128>}]} {
    %c0 = arith.constant 0 : index
    %c0_0 = arith.constant 0 : index
    %0 = vector.load %arg1[%c0, %c0_0] : memref<56x32xbf16, #tpu.memory_space<vmem>>, vector<56x32xbf16>
    %c0_1 = arith.constant 0 : index
    %c0_2 = arith.constant 0 : index
    %1 = vector.load %arg2[%c0_1, %c0_2] : memref<32x512xbf16, #tpu.memory_space<vmem>>, vector<32x512xbf16>
    %cst = arith.constant dense<0.000000e+00> : vector<56x512xf32>
    %2 = tpu.matmul %0, %1, %cst {dimension_numbers = #tpu.dot_dimension_numbers<[1], [0], [0], [1], [0, 0, 1, 1], [], []>} : vector<56x32xbf16>, vector<32x512xbf16>, vector<56x512xf32> -> vector<56x512xf32>
    %c0_3 = arith.constant 0 : index
    %c0_4 = arith.constant 0 : index
    %3 = vector.load %arg3[%c0_3, %c0_4] : memref<1x512xf32, #tpu.memory_space<vmem>>, vector<1x512xf32>
    %4 = vector.broadcast %3 : vector<1x512xf32> to vector<56x512xf32>
    %5 = arith.addf %2, %4 : vector<56x512xf32>
    %cst_5 = arith.constant 0.000000e+00 : f32
    %6 = vector.broadcast %cst_5 : f32 to vector<56x512xf32>
    %7 = arith.maximumf %5, %6 : vector<56x512xf32>
    %8 = arith.truncf %7 : vector<56x512xf32> to vector<56x512xbf16>
    %c0_6 = arith.constant 0 : index
    %c0_7 = arith.constant 0 : index
    %9 = vector.load %arg4[%c0_6, %c0_7] : memref<512x1024xbf16, #tpu.memory_space<vmem>>, vector<512x1024xbf16>
    %cst_8 = arith.constant dense<0.000000e+00> : vector<56x1024xf32>
    %10 = tpu.matmul %8, %9, %cst_8 {dimension_numbers = #tpu.dot_dimension_numbers<[1], [0], [0], [1], [0, 0, 1, 1], [], []>} : vector<56x512xbf16>, vector<512x1024xbf16>, vector<56x1024xf32> -> vector<56x1024xf32>
    %c0_9 = arith.constant 0 : index
    %c0_10 = arith.constant 0 : index
    %11 = vector.load %arg5[%c0_9, %c0_10] : memref<1x1024xf32, #tpu.memory_space<vmem>>, vector<1x1024xf32>
    %12 = vector.broadcast %11 : vector<1x1024xf32> to vector<56x1024xf32>
    %13 = arith.addf %10, %12 : vector<56x1024xf32>
    %cst_11 = arith.constant 0.000000e+00 : f32
    %14 = vector.broadcast %cst_11 : f32 to vector<56x1024xf32>
    %15 = arith.maximumf %13, %14 : vector<56x1024xf32>
    %16 = arith.truncf %15 : vector<56x1024xf32> to vector<56x1024xbf16>
    %c0_12 = arith.constant 0 : index
    %c0_13 = arith.constant 0 : index
    %17 = vector.load %arg6[%c0_12, %c0_13] : memref<1024x128xbf16, #tpu.memory_space<vmem>>, vector<1024x128xbf16>
    %cst_14 = arith.constant dense<0.000000e+00> : vector<56x128xf32>
    %18 = tpu.matmul %16, %17, %cst_14 {dimension_numbers = #tpu.dot_dimension_numbers<[1], [0], [0], [1], [0, 0, 1, 1], [], []>} : vector<56x1024xbf16>, vector<1024x128xbf16>, vector<56x128xf32> -> vector<56x128xf32>
    %c0_15 = arith.constant 0 : index
    %c0_16 = arith.constant 0 : index
    %19 = vector.load %arg7[%c0_15, %c0_16] : memref<1x128xf32, #tpu.memory_space<vmem>>, vector<1x128xf32>
    %20 = vector.broadcast %19 : vector<1x128xf32> to vector<56x128xf32>
    %21 = arith.addf %18, %20 : vector<56x128xf32>
    %cst_17 = arith.constant 0.000000e+00 : f32
    %22 = vector.broadcast %cst_17 : f32 to vector<56x128xf32>
    %23 = arith.maximumf %21, %22 : vector<56x128xf32>
    %c0_18 = arith.constant 0 : index
    %c0_19 = arith.constant 0 : index
    %24 = vector.load %arg8[%c0_18, %c0_19] : memref<56x128xf32, #tpu.memory_space<vmem>>, vector<56x128xf32>
    tpu.vector_store %arg8[%c0_18, %c0_19], %23 {strides = array<i32>} : memref<56x128xf32, #tpu.memory_space<vmem>>, vector<56x128xf32>,
    return
  }
  func.func @transform_0(%arg0: i32) -> (i32, i32) {
    %c0_i32 = arith.constant 0 : i32
    %c0_i32_0 = arith.constant 0 : i32
    return %arg0, %c0_i32 : i32, i32
  }
  func.func @transform_1(%arg0: i32) -> (i32, i32) {
    %c0_i32 = arith.constant 0 : i32
    %c0_i32_0 = arith.constant 0 : i32
    %c0_i32_1 = arith.constant 0 : i32
    return %c0_i32, %c0_i32_0 : i32, i32
  }
  func.func @transform_2(%arg0: i32) -> (i32, i32) {
    %c0_i32 = arith.constant 0 : i32
    %c0_i32_0 = arith.constant 0 : i32
    %c0_i32_1 = arith.constant 0 : i32
    return %c0_i32, %c0_i32_0 : i32, i32
  }
  func.func @transform_3(%arg0: i32) -> (i32, i32) {
    %c0_i32 = arith.constant 0 : i32
    %c0_i32_0 = arith.constant 0 : i32
    %c0_i32_1 = arith.constant 0 : i32
    return %c0_i32, %c0_i32_0 : i32, i32
  }
  func.func @transform_4(%arg0: i32) -> (i32, i32) {
    %c0_i32 = arith.constant 0 : i32
    %c0_i32_0 = arith.constant 0 : i32
    %c0_i32_1 = arith.constant 0 : i32
    return %c0_i32, %c0_i32_0 : i32, i32
  }
  func.func @transform_5(%arg0: i32) -> (i32, i32) {
    %c0_i32 = arith.constant 0 : i32
    %c0_i32_0 = arith.constant 0 : i32
    %c0_i32_1 = arith.constant 0 : i32
    return %c0_i32, %c0_i32_0 : i32, i32
  }
  func.func @transform_6(%arg0: i32) -> (i32, i32) {
    %c0_i32 = arith.constant 0 : i32
    %c0_i32_0 = arith.constant 0 : i32
    %c0_i32_1 = arith.constant 0 : i32
    return %c0_i32, %c0_i32_0 : i32, i32
  }
  func.func @transform_7(%arg0: i32) -> (i32, i32) {
    %c0_i32 = arith.constant 0 : i32
    %c0_i32_0 = arith.constant 0 : i32
    return %arg0, %c0_i32 : i32, i32
  }
}

</mosaic_0001>

<llo_original>
// kernel: tpu_custom_call.1
$region0: #{tpu_custom_call.1}
  #allocation0 [shape = 'u32[]', space=smem, size = 0x4, offset = 0x4, fixed_abs, tag = 'smem constant byte address 0x4 - core index']
  #allocation1 [shape = 'u32[144,128]{1,0:T(1,128)}', space=vmem, size = 0x12000, scoped, tag = 'internal scratch']
  %s0 = inlined_call_operand.vmem [shape: bf16[56,32], index: 0, kind: input, shape index: {}]
  %s1 = inlined_call_operand.hbm [shape: bf16[32,512], index: 1, kind: input, shape index: {}]
  %s2 = inlined_call_operand.vmem [shape: f32[1,512], index: 2, kind: input, shape index: {}]
  %s3 = inlined_call_operand.hbm [shape: bf16[512,1024], index: 3, kind: input, shape index: {}]
  %s4 = inlined_call_operand.vmem [shape: f32[1,1024], index: 4, kind: input, shape index: {}]
  %s5 = inlined_call_operand.hbm [shape: bf16[1024,128], index: 5, kind: input, shape index: {}]
  %s6 = inlined_call_operand.vmem [shape: f32[1,128], index: 6, kind: input, shape index: {}]
  %s7 = inlined_call_operand.hbm [shape: f32[56,128], index: 7, kind: output, shape index: {}]
  %s8 = sld [smem:[#allocation0]]
  $region50: #{tpu_custom_call.1} parent=0
    _
  %s10 = ssub.s32 1, %s8
  %s11 = scalar_select 0, %s10, %s8
  $region1: #{tpu_custom_call.1} parent=0
    #allocation2 [shape = 'u8[32768]{0}', space=vmem, size = 0x8000, scoped, tag = 'input window, operand 1, single buffered']
    #allocation3 [shape = 's32[1]{0}', space=sflag, size = 0x4, scoped, tag = 'scoped memory for tpu_custom_call.1']
    #allocation4 [shape = 's32[1]{0}', space=sflag, size = 0x4, scoped, tag = 'scoped memory for tpu_custom_call.1']
    #allocation5 [shape = 'u8[1048576]{0}', space=vmem, size = 0x100000, scoped, tag = 'input window, operand 3, single buffered']
    #allocation6 [shape = 's32[1]{0}', space=sflag, size = 0x4, scoped, tag = 'scoped memory for tpu_custom_call.1']
    #allocation7 [shape = 'u8[262144]{0}', space=vmem, size = 0x40000, scoped, tag = 'input window, operand 5, single buffered']
    #allocation8 [shape = 'u8[28672]{0}', space=vmem, size = 0x7000, scoped, tag = 'output window, operand 0, single buffered']
    %12 = vsyncpa [#allocation3], 0
    %13 = vsyncpa [#allocation6], 0
    %14 = vsyncpa [#allocation4], 0
    // Predicated region
    $region2: #{tpu_custom_call.1} parent=1 // pred_check
      _
    $region3: #{tpu_custom_call.1} parent=1 // pred_check_branch
      %16 = sbr.rel (0) target = $region5
    $region4: #{tpu_custom_call.1} parent=1 // pred_region
      _
    $region5: #{tpu_custom_call.1} parent=1 // pred_fallthru
      _
    // Predicated region
    $region6: #{tpu_custom_call.1} parent=1 // pred_check
      _
    $region7: #{tpu_custom_call.1} parent=1 // pred_check_branch
      %18 = sbr.rel (0) target = $region9
    $region8: #{tpu_custom_call.1} parent=1 // pred_region
      %s20 = ssub.s32 1024, 1024
      %21 = vsyncadd [#allocation3], %s20
      %s22 = sshll.u32 [#allocation2], 4
      %s23 = int_to_ptr.vmem [resolvable:$true] %s22
      %28 = dma.hbm_to_vmem [thread:$0]  %s1, 1024, %s23, [#allocation3], 256, 256, 16
    $region9: #{tpu_custom_call.1} parent=1 // pred_fallthru
      _
    // Predicated region
    $region10: #{tpu_custom_call.1} parent=1 // pred_check
      _
    $region11: #{tpu_custom_call.1} parent=1 // pred_check_branch
      %30 = sbr.rel (0) target = $region13
    $region12: #{tpu_custom_call.1} parent=1 // pred_region
      _
    $region13: #{tpu_custom_call.1} parent=1 // pred_fallthru
      _
    // Predicated region
    $region14: #{tpu_custom_call.1} parent=1 // pred_check
      _
    $region15: #{tpu_custom_call.1} parent=1 // pred_check_branch
      %32 = sbr.rel (0) target = $region17
    $region16: #{tpu_custom_call.1} parent=1 // pred_region
      %s34 = ssub.s32 32768, 32768
      %35 = vsyncadd [#allocation6], %s34
      %s36 = sshll.u32 [#allocation5], 4
      %s37 = int_to_ptr.vmem [resolvable:$true] %s36
      %42 = dma.hbm_to_vmem [thread:$0]  %s3, 32768, %s37, [#allocation6], 512, 512, 32
    $region17: #{tpu_custom_call.1} parent=1 // pred_fallthru
      _
    // Predicated region
    $region18: #{tpu_custom_call.1} parent=1 // pred_check
      _
    $region19: #{tpu_custom_call.1} parent=1 // pred_check_branch
      %44 = sbr.rel (0) target = $region21
    $region20: #{tpu_custom_call.1} parent=1 // pred_region
      _
    $region21: #{tpu_custom_call.1} parent=1 // pred_fallthru
      _
    // Predicated region
    $region22: #{tpu_custom_call.1} parent=1 // pred_check
      _
    $region23: #{tpu_custom_call.1} parent=1 // pred_check_branch
      %46 = sbr.rel (0) target = $region25
    $region24: #{tpu_custom_call.1} parent=1 // pred_region
      %s48 = ssub.s32 8192, 8192
      %49 = vsyncadd [#allocation6], %s48
      %s50 = sshll.u32 [#allocation7], 4
      %s51 = int_to_ptr.vmem [resolvable:$true] %s50
      %56 = dma.hbm_to_vmem [thread:$0]  %s5, 8192, %s51, [#allocation6], 64, 64, 4
    $region25: #{tpu_custom_call.1} parent=1 // pred_fallthru
      _
    // Predicated region
    $region26: #{tpu_custom_call.1} parent=1 // pred_check
      _
    $region27: #{tpu_custom_call.1} parent=1 // pred_check_branch
      %58 = sbr.rel (0) target = $region29
    $region28: #{tpu_custom_call.1} parent=1 // pred_region
      _
    $region29: #{tpu_custom_call.1} parent=1 // pred_fallthru
      _
    // Predicated region
    $region30: #{tpu_custom_call.1} parent=1 // pred_check
      _
    $region31: #{tpu_custom_call.1} parent=1 // pred_check_branch
      %60 = sbr.rel (0) target = $region33
    $region32: #{tpu_custom_call.1} parent=1 // pred_region
      %61 = dma.done [#allocation3], 1024
    $region33: #{tpu_custom_call.1} parent=1 // pred_fallthru
      _
    // Predicated region
    $region34: #{tpu_custom_call.1} parent=1 // pred_check
      _
    $region35: #{tpu_custom_call.1} parent=1 // pred_check_branch
      %63 = sbr.rel (0) target = $region37
    $region36: #{tpu_custom_call.1} parent=1 // pred_region
      %64 = dma.done [#allocation6], 32768
    $region37: #{tpu_custom_call.1} parent=1 // pred_fallthru
      _
    // Predicated region
    $region38: #{tpu_custom_call.1} parent=1 // pred_check
      _
    $region39: #{tpu_custom_call.1} parent=1 // pred_check_branch
      %66 = sbr.rel (0) target = $region41
    $region40: #{tpu_custom_call.1} parent=1 // pred_region
      %67 = dma.done [#allocation6], 8192
    $region41: #{tpu_custom_call.1} parent=1 // pred_fallthru
      _
    %v69 = vld [vmem:[%s0] sm:$0xf]
    %v70 = vld [vmem:[%s0 + $0x4] sm:$0xf]
    %v71 = vld [vmem:[%s0 + $0x8] sm:$0xf]
    %v72 = vld [vmem:[%s0 + $0xc] sm:$0xf]
    %v73 = vld [vmem:[%s0 + $0x10] sm:$0xf]
    %v74 = vld [vmem:[%s0 + $0x14] sm:$0xf]
    %v75 = vld [vmem:[%s0 + $0x18] sm:$0xf]
    %v76 = vld [vmem:[#allocation2] sm:$0xff]
    %v77 = vld [vmem:[#allocation2 + $0x8] sm:$0xff]
    %v78 = vld [vmem:[#allocation2 + $0x10] sm:$0xff]
    %v79 = vld [vmem:[#allocation2 + $0x18] sm:$0xff]
    %v80 = vld [vmem:[#allocation2 + $0x20] sm:$0xff]
    %v81 = vld [vmem:[#allocation2 + $0x28] sm:$0xff]
    %v82 = vld [vmem:[#allocation2 + $0x30] sm:$0xff]
    %v83 = vld [vmem:[#allocation2 + $0x38] sm:$0xff]
    %v84 = vld [vmem:[%s2] sm:$0xf]
    %v86 = vlaneseq
    %v87 = vshrl.u32 %v86, 7
    %v88 = vsub.s32 0, %v87
    %v89 = vrot.slane %v84, %v88
    %v90 = vlaneseq
    %v91 = vshrl.u32 %v90, 7
    %v92 = vsub.s32 1, %v91
    %v93 = vrot.slane %v84, %v92
    %v94 = vlaneseq
    %v95 = vshrl.u32 %v94, 7
    %v96 = vsub.s32 2, %v95
    %v97 = vrot.slane %v84, %v96
    %v98 = vlaneseq
    %v99 = vshrl.u32 %v98, 7
    %v100 = vsub.s32 3, %v99
    %v101 = vrot.slane %v84, %v100
    %v113 = vunpack.c.l.b16 %v69
    %v114 = vunpack.c.l.b16 %v70
    %v115 = vunpack.c.l.b16 %v71
    %v116 = vunpack.c.l.b16 %v72
    %v117 = vunpack.c.l.b16 %v73
    %v118 = vunpack.c.l.b16 %v74
    %v119 = vunpack.c.l.b16 %v75
    %v120 = vpack.c.b16 %v114, %v113
    %v121 = vpack.c.b16 %v116, %v115
    %v122 = vpack.c.b16 %v118, %v117
    %v123 = vpack.c.b16 %v119, %v119
    %v132 = vunpack.c.l.b16 %v76
    %v133 = vunpack.c.h.b16 %v76
    %v134 = vunpack.c.l.b16 %v77
    %v135 = vunpack.c.h.b16 %v77
    %v136 = vunpack.c.l.b16 %v78
    %v137 = vunpack.c.h.b16 %v78
    %v138 = vunpack.c.l.b16 %v79
    %v139 = vunpack.c.h.b16 %v79
    %v140 = vunpack.c.l.b16 %v80
    %v141 = vunpack.c.h.b16 %v80
    %v142 = vunpack.c.l.b16 %v81
    %v143 = vunpack.c.h.b16 %v81
    %v144 = vunpack.c.l.b16 %v82
    %v145 = vunpack.c.h.b16 %v82
    %v146 = vunpack.c.l.b16 %v83
    %v147 = vunpack.c.h.b16 %v83
    %v148 = vpack.c.b16 %v136, %v132
    %v149 = vpack.c.b16 %v137, %v133
    %v150 = vpack.c.b16 %v138, %v134
    %v151 = vpack.c.b16 %v139, %v135
    %v152 = vpack.c.b16 %v144, %v140
    %v153 = vpack.c.b16 %v145, %v141
    %v154 = vpack.c.b16 %v146, %v142
    %v155 = vpack.c.b16 %v147, %v143
    %vm164 = vcmask 261120
    %v166 = vsel %vm164, %v120, 0
    %v169 = vsel %vm164, %v121, 0
    %v172 = vsel %vm164, %v122, 0
    %v175 = vsel %vm164, %v123, 0
    %177 = vmatprep.subr.bf16.mxu0 0
    %178 = vmatpush1.bf16.msra.mxu0 0
    %179 = vmatprep.subr.bf16.mxu0 0
    %180 = vmatpush1.bf16.msra.mxu0 0
    %181 = vmatprep.subr.bf16.mxu0 0
    %182 = vmatpush1.bf16.msra.mxu0 0
    %183 = vmatprep.subr.bf16.mxu0 0
    %184 = vmatpush1.bf16.msra.mxu0 0
    %185 = vmatprep.subr.bf16.mxu0 0
    %186 = vmatpush1.bf16.msra.mxu0 0
    %187 = vmatprep.subr.bf16.mxu0 0
    %188 = vmatpush1.bf16.msra.mxu0 0
    %189 = vmatprep.subr.bf16.mxu0 %v153
    %190 = vmatpush1.bf16.msra.mxu0 %v152
    %191 = vmatprep.subr.bf16.mxu0 %v149
    %192 = vmatpush1.bf16.msra.mxu0 %v148
    %193 = vmatprep.subr.bf16.mxu0 0
    %194 = vmatpush2.bf16.msra.mxu0 0
    %195 = vmatprep.subr.bf16.mxu0 0
    %196 = vmatpush2.bf16.msra.mxu0 0
    %197 = vmatprep.subr.bf16.mxu0 0
    %198 = vmatpush2.bf16.msra.mxu0 0
    %199 = vmatprep.subr.bf16.mxu0 0
    %200 = vmatpush2.bf16.msra.mxu0 0
    %201 = vmatprep.subr.bf16.mxu0 0
    %202 = vmatpush2.bf16.msra.mxu0 0
    %203 = vmatprep.subr.bf16.mxu0 0
    %204 = vmatpush2.bf16.msra.mxu0 0
    %205 = vmatprep.subr.bf16.mxu0 0
    %206 = vmatpush2.bf16.msra.mxu0 0
    %207 = vmatprep.subr.bf16.mxu0 0
    %208 = vmatpush2.bf16.msra.mxu0 0
    %209 = vmatprep.mubr.bf16.mxu0 0
    %210 = vmatmul.mubr.bf16.gmra.mxu0 %v166
    %v211 = vpop.f32.mrf.mxu0
    %v212 = vadd.f32 %v89, %v211
    %v213 = vpop.f32.mrf.mxu0
    %v214 = vadd.f32 %v93, %v213
    %v215 = vpop.f32.mrf.mxu0
    %v216 = vadd.f32 %v89, %v215
    %v217 = vpop.f32.mrf.mxu0
    %v218 = vadd.f32 %v93, %v217
    %219 = vmatprep.mubr.bf16.mxu0 0
    %220 = vmatmul.mubr.bf16.gmra.mxu0 %v169
    %v221 = vpop.f32.mrf.mxu0
    %v222 = vadd.f32 %v89, %v221
    %v223 = vpop.f32.mrf.mxu0
    %v224 = vadd.f32 %v93, %v223
    %v225 = vpop.f32.mrf.mxu0
    %v226 = vadd.f32 %v89, %v225
    %v227 = vpop.f32.mrf.mxu0
    %v228 = vadd.f32 %v93, %v227
    %229 = vmatprep.mubr.bf16.mxu0 0
    %230 = vmatmul.mubr.bf16.gmra.mxu0 %v172
    %v231 = vpop.f32.mrf.mxu0
    %v232 = vadd.f32 %v89, %v231
    %v233 = vpop.f32.mrf.mxu0
    %v234 = vadd.f32 %v93, %v233
    %v235 = vpop.f32.mrf.mxu0
    %v236 = vadd.f32 %v89, %v235
    %v237 = vpop.f32.mrf.mxu0
    %v238 = vadd.f32 %v93, %v237
    %239 = vmatprep.mubr.bf16.mxu0 0
    %240 = vmatmul.mubr.bf16.gmra.mxu0 %v175
    %v241 = vpop.f32.mrf.mxu0
    %v242 = vadd.f32 %v89, %v241
    %v243 = vpop.f32.mrf.mxu0
    %v244 = vadd.f32 %v93, %v243
    %v245 = vpop.f32.mrf.mxu0
    %v246 = vpop.f32.mrf.mxu0
    %247 = vdwg.mxu0
    %248 = vmatprep.subr.bf16.mxu0 0
    %249 = vmatpush1.bf16.msra.mxu0 0
    %250 = vmatprep.subr.bf16.mxu0 0
    %251 = vmatpush1.bf16.msra.mxu0 0
    %252 = vmatprep.subr.bf16.mxu0 0
    %253 = vmatpush1.bf16.msra.mxu0 0
    %254 = vmatprep.subr.bf16.mxu0 0
    %255 = vmatpush1.bf16.msra.mxu0 0
    %256 = vmatprep.subr.bf16.mxu0 0
    %257 = vmatpush1.bf16.msra.mxu0 0
    %258 = vmatprep.subr.bf16.mxu0 0
    %259 = vmatpush1.bf16.msra.mxu0 0
    %260 = vmatprep.subr.bf16.mxu0 %v155
    %261 = vmatpush1.bf16.msra.mxu0 %v154
    %262 = vmatprep.subr.bf16.mxu0 %v151
    %263 = vmatpush1.bf16.msra.mxu0 %v150
    %264 = vmatprep.subr.bf16.mxu0 0
    %265 = vmatpush2.bf16.msra.mxu0 0
    %266 = vmatprep.subr.bf16.mxu0 0
    %267 = vmatpush2.bf16.msra.mxu0 0
    %268 = vmatprep.subr.bf16.mxu0 0
    %269 = vmatpush2.bf16.msra.mxu0 0
    %270 = vmatprep.subr.bf16.mxu0 0
    %271 = vmatpush2.bf16.msra.mxu0 0
    %272 = vmatprep.subr.bf16.mxu0 0
    %273 = vmatpush2.bf16.msra.mxu0 0
    %274 = vmatprep.subr.bf16.mxu0 0
    %275 = vmatpush2.bf16.msra.mxu0 0
    %276 = vmatprep.subr.bf16.mxu0 0
    %277 = vmatpush2.bf16.msra.mxu0 0
    %278 = vmatprep.subr.bf16.mxu0 0
    %279 = vmatpush2.bf16.msra.mxu0 0
    %280 = vmatprep.mubr.bf16.mxu0 0
    %281 = vmatmul.mubr.bf16.gmra.mxu0 %v166
    %v282 = vpop.f32.mrf.mxu0
    %v283 = vadd.f32 %v97, %v282
    %v284 = vpop.f32.mrf.mxu0
    %v285 = vadd.f32 %v101, %v284
    %v286 = vpop.f32.mrf.mxu0
    %v287 = vadd.f32 %v97, %v286
    %v288 = vpop.f32.mrf.mxu0
    %v289 = vadd.f32 %v101, %v288
    %290 = vmatprep.mubr.bf16.mxu0 0
    %291 = vmatmul.mubr.bf16.gmra.mxu0 %v169
    %v292 = vpop.f32.mrf.mxu0
    %v293 = vadd.f32 %v97, %v292
    %v294 = vpop.f32.mrf.mxu0
    %v295 = vadd.f32 %v101, %v294
    %v296 = vpop.f32.mrf.mxu0
    %v297 = vadd.f32 %v97, %v296
    %v298 = vpop.f32.mrf.mxu0
    %v299 = vadd.f32 %v101, %v298
    %300 = vmatprep.mubr.bf16.mxu0 0
    %301 = vmatmul.mubr.bf16.gmra.mxu0 %v172
    %v302 = vpop.f32.mrf.mxu0
    %v303 = vadd.f32 %v97, %v302
    %v304 = vpop.f32.mrf.mxu0
    %v305 = vadd.f32 %v101, %v304
    %v306 = vpop.f32.mrf.mxu0
    %v307 = vadd.f32 %v97, %v306
    %v308 = vpop.f32.mrf.mxu0
    %v309 = vadd.f32 %v101, %v308
    %310 = vmatprep.mubr.bf16.mxu0 0
    %311 = vmatmul.mubr.bf16.gmra.mxu0 %v175
    %v312 = vpop.f32.mrf.mxu0
    %v313 = vadd.f32 %v97, %v312
    %v314 = vpop.f32.mrf.mxu0
    %v315 = vadd.f32 %v101, %v314
    %v316 = vpop.f32.mrf.mxu0
    %v317 = vpop.f32.mrf.mxu0
    %318 = vdwg.mxu0
    %v319 = vmax.f32 %v212, 0.0
    %v320 = vmax.f32 %v214, 0.0
    %v321 = vmax.f32 %v283, 0.0
    %v322 = vmax.f32 %v285, 0.0
    %v323 = vmax.f32 %v216, 0.0
    %v324 = vmax.f32 %v218, 0.0
    %v325 = vmax.f32 %v287, 0.0
    %v326 = vmax.f32 %v289, 0.0
    %v327 = vmax.f32 %v222, 0.0
    %v328 = vmax.f32 %v224, 0.0
    %v329 = vmax.f32 %v293, 0.0
    %v330 = vmax.f32 %v295, 0.0
    %v331 = vmax.f32 %v226, 0.0
    %v332 = vmax.f32 %v228, 0.0
    %v333 = vmax.f32 %v297, 0.0
    %v334 = vmax.f32 %v299, 0.0
    %v335 = vmax.f32 %v232, 0.0
    %v336 = vmax.f32 %v234, 0.0
    %v337 = vmax.f32 %v303, 0.0
    %v338 = vmax.f32 %v305, 0.0
    %v339 = vmax.f32 %v236, 0.0
    %v340 = vmax.f32 %v238, 0.0
    %v341 = vmax.f32 %v307, 0.0
    %v342 = vmax.f32 %v309, 0.0
    %v343 = vmax.f32 %v242, 0.0
    %v344 = vmax.f32 %v244, 0.0
    %v345 = vmax.f32 %v313, 0.0
    %v346 = vmax.f32 %v315, 0.0
    %v347 = vpack.c.bf16 %v323, %v319
    %v348 = vpack.c.bf16 %v324, %v320
    %v349 = vpack.c.bf16 %v325, %v321
    %v350 = vpack.c.bf16 %v326, %v322
    %v351 = vpack.c.bf16 %v331, %v327
    %v352 = vpack.c.bf16 %v332, %v328
    %v353 = vpack.c.bf16 %v333, %v329
    %v354 = vpack.c.bf16 %v334, %v330
    %v355 = vpack.c.bf16 %v339, %v335
    %v356 = vpack.c.bf16 %v340, %v336
    %v357 = vpack.c.bf16 %v341, %v337
    %v358 = vpack.c.bf16 %v342, %v338
    %v359 = vpack.c.bf16 %v343, %v343
    %v360 = vpack.c.bf16 %v344, %v344
    %v361 = vpack.c.bf16 %v345, %v345
    %v362 = vpack.c.bf16 %v346, %v346
    %v363 = vld [vmem:[#allocation5] sm:$0xff]
    %v364 = vld [vmem:[#allocation5 + $0x8] sm:$0xff]
    %v365 = vld [vmem:[#allocation5 + $0x10] sm:$0xff]
    %v366 = vld [vmem:[#allocation5 + $0x18] sm:$0xff]
    %v367 = vld [vmem:[#allocation5 + $0x20] sm:$0xff]
    %v368 = vld [vmem:[#allocation5 + $0x28] sm:$0xff]
    %v369 = vld [vmem:[#allocation5 + $0x30] sm:$0xff]
    %v370 = vld [vmem:[#allocation5 + $0x38] sm:$0xff]
    %v371 = vld [vmem:[#allocation5 + $0x40] sm:$0xff]
    %v372 = vld [vmem:[#allocation5 + $0x48] sm:$0xff]
    %v373 = vld [vmem:[#allocation5 + $0x50] sm:$0xff]
    %v374 = vld [vmem:[#allocation5 + $0x58] sm:$0xff]
    %v375 = vld [vmem:[#allocation5 + $0x60] sm:$0xff]
    %v376 = vld [vmem:[#allocation5 + $0x68] sm:$0xff]
    %v377 = vld [vmem:[#allocation5 + $0x70] sm:$0xff]
    %v378 = vld [vmem:[#allocation5 + $0x78] sm:$0xff]
    %v379 = vld [vmem:[#allocation5 + $0x80] sm:$0xff]
    %v380 = vld [vmem:[#allocation5 + $0x88] sm:$0xff]
    %v381 = vld [vmem:[#allocation5 + $0x90] sm:$0xff]
    %v382 = vld [vmem:[#allocation5 + $0x98] sm:$0xff]
    %v383 = vld [vmem:[#allocation5 + $0xa0] sm:$0xff]
    %v384 = vld [vmem:[#allocation5 + $0xa8] sm:$0xff]
    %v385 = vld [vmem:[#allocation5 + $0xb0] sm:$0xff]
    %v386 = vld [vmem:[#allocation5 + $0xb8] sm:$0xff]
    %v387 = vld [vmem:[#allocation5 + $0xc0] sm:$0xff]
    %v388 = vld [vmem:[#allocation5 + $0xc8] sm:$0xff]
    %v389 = vld [vmem:[#allocation5 + $0xd0] sm:$0xff]
    %v390 = vld [vmem:[#allocation5 + $0xd8] sm:$0xff]
    %v391 = vld [vmem:[#allocation5 + $0xe0] sm:$0xff]
    %v392 = vld [vmem:[#allocation5 + $0xe8] sm:$0xff]
    %v393 = vld [vmem:[#allocation5 + $0xf0] sm:$0xff]
    %v394 = vld [vmem:[#allocation5 + $0xf8] sm:$0xff]
    %v395 = vld [vmem:[#allocation5 + $0x100] sm:$0xff]
    %v396 = vld [vmem:[#allocation5 + $0x108] sm:$0xff]
    %v397 = vld [vmem:[#allocation5 + $0x110] sm:$0xff]
    %v398 = vld [vmem:[#allocation5 + $0x118] sm:$0xff]
    %v399 = vld [vmem:[#allocation5 + $0x120] sm:$0xff]
    %v400 = vld [vmem:[#allocation5 + $0x128] sm:$0xff]
    %v401 = vld [vmem:[#allocation5 + $0x130] sm:$0xff]
    %v402 = vld [vmem:[#allocation5 + $0x138] sm:$0xff]
    %v403 = vld [vmem:[#allocation5 + $0x140] sm:$0xff]
    %v404 = vld [vmem:[#allocation5 + $0x148] sm:$0xff]
    %v405 = vld [vmem:[#allocation5 + $0x150] sm:$0xff]
    %v406 = vld [vmem:[#allocation5 + $0x158] sm:$0xff]
    %v407 = vld [vmem:[#allocation5 + $0x160] sm:$0xff]
    %v408 = vld [vmem:[#allocation5 + $0x168] sm:$0xff]
    %v409 = vld [vmem:[#allocation5 + $0x170] sm:$0xff]
    %v410 = vld [vmem:[#allocation5 + $0x178] sm:$0xff]
    %v411 = vld [vmem:[#allocation5 + $0x180] sm:$0xff]
    %v412 = vld [vmem:[#allocation5 + $0x188] sm:$0xff]
    %v413 = vld [vmem:[#allocation5 + $0x190] sm:$0xff]
    %v414 = vld [vmem:[#allocation5 + $0x198] sm:$0xff]
    %v415 = vld [vmem:[#allocation5 + $0x1a0] sm:$0xff]
    %v416 = vld [vmem:[#allocation5 + $0x1a8] sm:$0xff]
    %v417 = vld [vmem:[#allocation5 + $0x1b0] sm:$0xff]
    %v418 = vld [vmem:[#allocation5 + $0x1b8] sm:$0xff]
    %v419 = vld [vmem:[#allocation5 + $0x1c0] sm:$0xff]
    %v420 = vld [vmem:[#allocation5 + $0x1c8] sm:$0xff]
    %v421 = vld [vmem:[#allocation5 + $0x1d0] sm:$0xff]
    %v422 = vld [vmem:[#allocation5 + $0x1d8] sm:$0xff]
    %v423 = vld [vmem:[#allocation5 + $0x1e0] sm:$0xff]
    %v424 = vld [vmem:[#allocation5 + $0x1e8] sm:$0xff]
    %v425 = vld [vmem:[#allocation5 + $0x1f0] sm:$0xff]
    %v426 = vld [vmem:[#allocation5 + $0x1f8] sm:$0xff]
    %v427 = vld [vmem:[#allocation5 + $0x200] sm:$0xff]
    %v428 = vld [vmem:[#allocation5 + $0x208] sm:$0xff]
    %v429 = vld [vmem:[#allocation5 + $0x210] sm:$0xff]
    %v430 = vld [vmem:[#allocation5 + $0x218] sm:$0xff]
    %v431 = vld [vmem:[#allocation5 + $0x220] sm:$0xff]
    %v432 = vld [vmem:[#allocation5 + $0x228] sm:$0xff]
    %v433 = vld [vmem:[#allocation5 + $0x230] sm:$0xff]
    %v434 = vld [vmem:[#allocation5 + $0x238] sm:$0xff]
    %v435 = vld [vmem:[#allocation5 + $0x240] sm:$0xff]
    %v436 = vld [vmem:[#allocation5 + $0x248] sm:$0xff]
    %v437 = vld [vmem:[#allocation5 + $0x250] sm:$0xff]
    %v438 = vld [vmem:[#allocation5 + $0x258] sm:$0xff]
    %v439 = vld [vmem:[#allocation5 + $0x260] sm:$0xff]
    %v440 = vld [vmem:[#allocation5 + $0x268] sm:$0xff]
    %v441 = vld [vmem:[#allocation5 + $0x270] sm:$0xff]
    %v442 = vld [vmem:[#allocation5 + $0x278] sm:$0xff]
    %v443 = vld [vmem:[#allocation5 + $0x280] sm:$0xff]
    %v444 = vld [vmem:[#allocation5 + $0x288] sm:$0xff]
    %v445 = vld [vmem:[#allocation5 + $0x290] sm:$0xff]
    %v446 = vld [vmem:[#allocation5 + $0x298] sm:$0xff]
    %v447 = vld [vmem:[#allocation5 + $0x2a0] sm:$0xff]
    %v448 = vld [vmem:[#allocation5 + $0x2a8] sm:$0xff]
    %v449 = vld [vmem:[#allocation5 + $0x2b0] sm:$0xff]
    %v450 = vld [vmem:[#allocation5 + $0x2b8] sm:$0xff]
    %v451 = vld [vmem:[#allocation5 + $0x2c0] sm:$0xff]
    %v452 = vld [vmem:[#allocation5 + $0x2c8] sm:$0xff]
    %v453 = vld [vmem:[#allocation5 + $0x2d0] sm:$0xff]
    %v454 = vld [vmem:[#allocation5 + $0x2d8] sm:$0xff]
    %v455 = vld [vmem:[#allocation5 + $0x2e0] sm:$0xff]
    %v456 = vld [vmem:[#allocation5 + $0x2e8] sm:$0xff]
    %v457 = vld [vmem:[#allocation5 + $0x2f0] sm:$0xff]
    %v458 = vld [vmem:[#allocation5 + $0x2f8] sm:$0xff]
    %v459 = vld [vmem:[#allocation5 + $0x300] sm:$0xff]
    %v460 = vld [vmem:[#allocation5 + $0x308] sm:$0xff]
    %v461 = vld [vmem:[#allocation5 + $0x310] sm:$0xff]
    %v462 = vld [vmem:[#allocation5 + $0x318] sm:$0xff]
    %v463 = vld [vmem:[#allocation5 + $0x320] sm:$0xff]
    %v464 = vld [vmem:[#allocation5 + $0x328] sm:$0xff]
    %v465 = vld [vmem:[#allocation5 + $0x330] sm:$0xff]
    %v466 = vld [vmem:[#allocation5 + $0x338] sm:$0xff]
    %v467 = vld [vmem:[#allocation5 + $0x340] sm:$0xff]
    %v468 = vld [vmem:[#allocation5 + $0x348] sm:$0xff]
    %v469 = vld [vmem:[#allocation5 + $0x350] sm:$0xff]
    %v470 = vld [vmem:[#allocation5 + $0x358] sm:$0xff]
    %v471 = vld [vmem:[#allocation5 + $0x360] sm:$0xff]
    %v472 = vld [vmem:[#allocation5 + $0x368] sm:$0xff]
    %v473 = vld [vmem:[#allocation5 + $0x370] sm:$0xff]
    %v474 = vld [vmem:[#allocation5 + $0x378] sm:$0xff]
    %v475 = vld [vmem:[#allocation5 + $0x380] sm:$0xff]
    %v476 = vld [vmem:[#allocation5 + $0x388] sm:$0xff]
    %v477 = vld [vmem:[#allocation5 + $0x390] sm:$0xff]
    %v478 = vld [vmem:[#allocation5 + $0x398] sm:$0xff]
    %v479 = vld [vmem:[#allocation5 + $0x3a0] sm:$0xff]
    %v480 = vld [vmem:[#allocation5 + $0x3a8] sm:$0xff]
    %v481 = vld [vmem:[#allocation5 + $0x3b0] sm:$0xff]
    %v482 = vld [vmem:[#allocation5 + $0x3b8] sm:$0xff]
    %v483 = vld [vmem:[#allocation5 + $0x3c0] sm:$0xff]
    %v484 = vld [vmem:[#allocation5 + $0x3c8] sm:$0xff]
    %v485 = vld [vmem:[#allocation5 + $0x3d0] sm:$0xff]
    %v486 = vld [vmem:[#allocation5 + $0x3d8] sm:$0xff]
    %v487 = vld [vmem:[#allocation5 + $0x3e0] sm:$0xff]
    %v488 = vld [vmem:[#allocation5 + $0x3e8] sm:$0xff]
    %v489 = vld [vmem:[#allocation5 + $0x3f0] sm:$0xff]
    %v490 = vld [vmem:[#allocation5 + $0x3f8] sm:$0xff]
    %v491 = vld [vmem:[#allocation5 + $0x400] sm:$0xff]
    %v492 = vld [vmem:[#allocation5 + $0x408] sm:$0xff]
    %v493 = vld [vmem:[#allocation5 + $0x410] sm:$0xff]
    %v494 = vld [vmem:[#allocation5 + $0x418] sm:$0xff]
    %v495 = vld [vmem:[#allocation5 + $0x420] sm:$0xff]
    %v496 = vld [vmem:[#allocation5 + $0x428] sm:$0xff]
    %v497 = vld [vmem:[#allocation5 + $0x430] sm:$0xff]
    %v498 = vld [vmem:[#allocation5 + $0x438] sm:$0xff]
    %v499 = vld [vmem:[#allocation5 + $0x440] sm:$0xff]
    %v500 = vld [vmem:[#allocation5 + $0x448] sm:$0xff]
    %v501 = vld [vmem:[#allocation5 + $0x450] sm:$0xff]
    %v502 = vld [vmem:[#allocation5 + $0x458] sm:$0xff]
    %v503 = vld [vmem:[#allocation5 + $0x460] sm:$0xff]
    %v504 = vld [vmem:[#allocation5 + $0x468] sm:$0xff]
    %v505 = vld [vmem:[#allocation5 + $0x470] sm:$0xff]
    %v506 = vld [vmem:[#allocation5 + $0x478] sm:$0xff]
    %v507 = vld [vmem:[#allocation5 + $0x480] sm:$0xff]
    %v508 = vld [vmem:[#allocation5 + $0x488] sm:$0xff]
    %v509 = vld [vmem:[#allocation5 + $0x490] sm:$0xff]
    %v510 = vld [vmem:[#allocation5 + $0x498] sm:$0xff]
    %v511 = vld [vmem:[#allocation5 + $0x4a0] sm:$0xff]
    %v512 = vld [vmem:[#allocation5 + $0x4a8] sm:$0xff]
    %v513 = vld [vmem:[#allocation5 + $0x4b0] sm:$0xff]
    %v514 = vld [vmem:[#allocation5 + $0x4b8] sm:$0xff]
    %v515 = vld [vmem:[#allocation5 + $0x4c0] sm:$0xff]
    %v516 = vld [vmem:[#allocation5 + $0x4c8] sm:$0xff]
    %v517 = vld [vmem:[#allocation5 + $0x4d0] sm:$0xff]
    %v518 = vld [vmem:[#allocation5 + $0x4d8] sm:$0xff]
    %v519 = vld [vmem:[#allocation5 + $0x4e0] sm:$0xff]
    %v520 = vld [vmem:[#allocation5 + $0x4e8] sm:$0xff]
    %v521 = vld [vmem:[#allocation5 + $0x4f0] sm:$0xff]
    %v522 = vld [vmem:[#allocation5 + $0x4f8] sm:$0xff]
    %v523 = vld [vmem:[#allocation5 + $0x500] sm:$0xff]
    %v524 = vld [vmem:[#allocation5 + $0x508] sm:$0xff]
    %v525 = vld [vmem:[#allocation5 + $0x510] sm:$0xff]
    %v526 = vld [vmem:[#allocation5 + $0x518] sm:$0xff]
    %v527 = vld [vmem:[#allocation5 + $0x520] sm:$0xff]
    %v528 = vld [vmem:[#allocation5 + $0x528] sm:$0xff]
    %v529 = vld [vmem:[#allocation5 + $0x530] sm:$0xff]
    %v530 = vld [vmem:[#allocation5 + $0x538] sm:$0xff]
    %v531 = vld [vmem:[#allocation5 + $0x540] sm:$0xff]
    %v532 = vld [vmem:[#allocation5 + $0x548] sm:$0xff]
    %v533 = vld [vmem:[#allocation5 + $0x550] sm:$0xff]
    %v534 = vld [vmem:[#allocation5 + $0x558] sm:$0xff]
    %v535 = vld [vmem:[#allocation5 + $0x560] sm:$0xff]
    %v536 = vld [vmem:[#allocation5 + $0x568] sm:$0xff]
    %v537 = vld [vmem:[#allocation5 + $0x570] sm:$0xff]
    %v538 = vld [vmem:[#allocation5 + $0x578] sm:$0xff]
    %v539 = vld [vmem:[#allocation5 + $0x580] sm:$0xff]
    %v540 = vld [vmem:[#allocation5 + $0x588] sm:$0xff]
    %v541 = vld [vmem:[#allocation5 + $0x590] sm:$0xff]
    %v542 = vld [vmem:[#allocation5 + $0x598] sm:$0xff]
    %v543 = vld [vmem:[#allocation5 + $0x5a0] sm:$0xff]
    %v544 = vld [vmem:[#allocation5 + $0x5a8] sm:$0xff]
    %v545 = vld [vmem:[#allocation5 + $0x5b0] sm:$0xff]
    %v546 = vld [vmem:[#allocation5 + $0x5b8] sm:$0xff]
    %v547 = vld [vmem:[#allocation5 + $0x5c0] sm:$0xff]
    %v548 = vld [vmem:[#allocation5 + $0x5c8] sm:$0xff]
    %v549 = vld [vmem:[#allocation5 + $0x5d0] sm:$0xff]
    %v550 = vld [vmem:[#allocation5 + $0x5d8] sm:$0xff]
    %v551 = vld [vmem:[#allocation5 + $0x5e0] sm:$0xff]
    %v552 = vld [vmem:[#allocation5 + $0x5e8] sm:$0xff]
    %v553 = vld [vmem:[#allocation5 + $0x5f0] sm:$0xff]
    %v554 = vld [vmem:[#allocation5 + $0x5f8] sm:$0xff]
    %v555 = vld [vmem:[#allocation5 + $0x600] sm:$0xff]
    %v556 = vld [vmem:[#allocation5 + $0x608] sm:$0xff]
    %v557 = vld [vmem:[#allocation5 + $0x610] sm:$0xff]
    %v558 = vld [vmem:[#allocation5 + $0x618] sm:$0xff]
    %v559 = vld [vmem:[#allocation5 + $0x620] sm:$0xff]
    %v560 = vld [vmem:[#allocation5 + $0x628] sm:$0xff]
    %v561 = vld [vmem:[#allocation5 + $0x630] sm:$0xff]
    %v562 = vld [vmem:[#allocation5 + $0x638] sm:$0xff]
    %v563 = vld [vmem:[#allocation5 + $0x640] sm:$0xff]
    %v564 = vld [vmem:[#allocation5 + $0x648] sm:$0xff]
    %v565 = vld [vmem:[#allocation5 + $0x650] sm:$0xff]
    %v566 = vld [vmem:[#allocation5 + $0x658] sm:$0xff]
    %v567 = vld [vmem:[#allocation5 + $0x660] sm:$0xff]
    %v568 = vld [vmem:[#allocation5 + $0x668] sm:$0xff]
    %v569 = vld [vmem:[#allocation5 + $0x670] sm:$0xff]
    %v570 = vld [vmem:[#allocation5 + $0x678] sm:$0xff]
    %v571 = vld [vmem:[#allocation5 + $0x680] sm:$0xff]
    %v572 = vld [vmem:[#allocation5 + $0x688] sm:$0xff]
    %v573 = vld [vmem:[#allocation5 + $0x690] sm:$0xff]
    %v574 = vld [vmem:[#allocation5 + $0x698] sm:$0xff]
    %v575 = vld [vmem:[#allocation5 + $0x6a0] sm:$0xff]
    %v576 = vld [vmem:[#allocation5 + $0x6a8] sm:$0xff]
    %v577 = vld [vmem:[#allocation5 + $0x6b0] sm:$0xff]
    %v578 = vld [vmem:[#allocation5 + $0x6b8] sm:$0xff]
    %v579 = vld [vmem:[#allocation5 + $0x6c0] sm:$0xff]
    %v580 = vld [vmem:[#allocation5 + $0x6c8] sm:$0xff]
    %v581 = vld [vmem:[#allocation5 + $0x6d0] sm:$0xff]
    %v582 = vld [vmem:[#allocation5 + $0x6d8] sm:$0xff]
    %v583 = vld [vmem:[#allocation5 + $0x6e0] sm:$0xff]
    %v584 = vld [vmem:[#allocation5 + $0x6e8] sm:$0xff]
    %v585 = vld [vmem:[#allocation5 + $0x6f0] sm:$0xff]
    %v586 = vld [vmem:[#allocation5 + $0x6f8] sm:$0xff]
    %v587 = vld [vmem:[#allocation5 + $0x700] sm:$0xff]
    %v588 = vld [vmem:[#allocation5 + $0x708] sm:$0xff]
    %v589 = vld [vmem:[#allocation5 + $0x710] sm:$0xff]
    %v590 = vld [vmem:[#allocation5 + $0x718] sm:$0xff]
    %v591 = vld [vmem:[#allocation5 + $0x720] sm:$0xff]
    %v592 = vld [vmem:[#allocation5 + $0x728] sm:$0xff]
    %v593 = vld [vmem:[#allocation5 + $0x730] sm:$0xff]
    %v594 = vld [vmem:[#allocation5 + $0x738] sm:$0xff]
    %v595 = vld [vmem:[#allocation5 + $0x740] sm:$0xff]
    %v596 = vld [vmem:[#allocation5 + $0x748] sm:$0xff]
    %v597 = vld [vmem:[#allocation5 + $0x750] sm:$0xff]
    %v598 = vld [vmem:[#allocation5 + $0x758] sm:$0xff]
    %v599 = vld [vmem:[#allocation5 + $0x760] sm:$0xff]
    %v600 = vld [vmem:[#allocation5 + $0x768] sm:$0xff]
    %v601 = vld [vmem:[#allocation5 + $0x770] sm:$0xff]
    %v602 = vld [vmem:[#allocation5 + $0x778] sm:$0xff]
    %v603 = vld [vmem:[#allocation5 + $0x780] sm:$0xff]
    %v604 = vld [vmem:[#allocation5 + $0x788] sm:$0xff]
    %v605 = vld [vmem:[#allocation5 + $0x790] sm:$0xff]
    %v606 = vld [vmem:[#allocation5 + $0x798] sm:$0xff]
    %v607 = vld [vmem:[#allocation5 + $0x7a0] sm:$0xff]
    %v608 = vld [vmem:[#allocation5 + $0x7a8] sm:$0xff]
    %v609 = vld [vmem:[#allocation5 + $0x7b0] sm:$0xff]
    %v610 = vld [vmem:[#allocation5 + $0x7b8] sm:$0xff]
    %v611 = vld [vmem:[#allocation5 + $0x7c0] sm:$0xff]
    %v612 = vld [vmem:[#allocation5 + $0x7c8] sm:$0xff]
    %v613 = vld [vmem:[#allocation5 + $0x7d0] sm:$0xff]
    %v614 = vld [vmem:[#allocation5 + $0x7d8] sm:$0xff]
    %v615 = vld [vmem:[#allocation5 + $0x7e0] sm:$0xff]
    %v616 = vld [vmem:[#allocation5 + $0x7e8] sm:$0xff]
    %v617 = vld [vmem:[#allocation5 + $0x7f0] sm:$0xff]
    %v618 = vld [vmem:[#allocation5 + $0x7f8] sm:$0xff]
    %v619 = vld [vmem:[%s4] sm:$0xff]
    %v621 = vlaneseq
    %v622 = vshrl.u32 %v621, 7
    %v623 = vsub.s32 0, %v622
    %v624 = vrot.slane %v619, %v623
    %v625 = vlaneseq
    %v626 = vshrl.u32 %v625, 7
    %v627 = vsub.s32 1, %v626
    %v628 = vrot.slane %v619, %v627
    %v629 = vlaneseq
    %v630 = vshrl.u32 %v629, 7
    %v631 = vsub.s32 2, %v630
    %v632 = vrot.slane %v619, %v631
    %v633 = vlaneseq
    %v634 = vshrl.u32 %v633, 7
    %v635 = vsub.s32 3, %v634
    %v636 = vrot.slane %v619, %v635
    %v637 = vlaneseq
    %v638 = vshrl.u32 %v637, 7
    %v639 = vsub.s32 4, %v638
    %v640 = vrot.slane %v619, %v639
    %v641 = vlaneseq
    %v642 = vshrl.u32 %v641, 7
    %v643 = vsub.s32 5, %v642
    %v644 = vrot.slane %v619, %v643
    %v645 = vlaneseq
    %v646 = vshrl.u32 %v645, 7
    %v647 = vsub.s32 6, %v646
    %v648 = vrot.slane %v619, %v647
    %v649 = vlaneseq
    %v650 = vshrl.u32 %v649, 7
    %v651 = vsub.s32 7, %v650
    %v652 = vrot.slane %v619, %v651
    %v917 = vunpack.c.l.b16 %v363
    %v918 = vunpack.c.h.b16 %v363
    %v919 = vunpack.c.l.b16 %v364
    %v920 = vunpack.c.h.b16 %v364
    %v921 = vunpack.c.l.b16 %v365
    %v922 = vunpack.c.h.b16 %v365
    %v923 = vunpack.c.l.b16 %v366
    %v924 = vunpack.c.h.b16 %v366
    %v925 = vunpack.c.l.b16 %v367
    %v926 = vunpack.c.h.b16 %v367
    %v927 = vunpack.c.l.b16 %v368
    %v928 = vunpack.c.h.b16 %v368
    %v929 = vunpack.c.l.b16 %v369
    %v930 = vunpack.c.h.b16 %v369
    %v931 = vunpack.c.l.b16 %v370
    %v932 = vunpack.c.h.b16 %v370
    %v933 = vunpack.c.l.b16 %v371
    %v934 = vunpack.c.h.b16 %v371
    %v935 = vunpack.c.l.b16 %v372
    %v936 = vunpack.c.h.b16 %v372
    %v937 = vunpack.c.l.b16 %v373
    %v938 = vunpack.c.h.b16 %v373
    %v939 = vunpack.c.l.b16 %v374
    %v940 = vunpack.c.h.b16 %v374
    %v941 = vunpack.c.l.b16 %v375
    %v942 = vunpack.c.h.b16 %v375
    %v943 = vunpack.c.l.b16 %v376
    %v944 = vunpack.c.h.b16 %v376
    %v945 = vunpack.c.l.b16 %v377
    %v946 = vunpack.c.h.b16 %v377
    %v947 = vunpack.c.l.b16 %v378
    %v948 = vunpack.c.h.b16 %v378
    %v949 = vunpack.c.l.b16 %v379
    %v950 = vunpack.c.h.b16 %v379
    %v951 = vunpack.c.l.b16 %v380
    %v952 = vunpack.c.h.b16 %v380
    %v953 = vunpack.c.l.b16 %v381
    %v954 = vunpack.c.h.b16 %v381
    %v955 = vunpack.c.l.b16 %v382
    %v956 = vunpack.c.h.b16 %v382
    %v957 = vunpack.c.l.b16 %v383
    %v958 = vunpack.c.h.b16 %v383
    %v959 = vunpack.c.l.b16 %v384
    %v960 = vunpack.c.h.b16 %v384
    %v961 = vunpack.c.l.b16 %v385
    %v962 = vunpack.c.h.b16 %v385
    %v963 = vunpack.c.l.b16 %v386
    %v964 = vunpack.c.h.b16 %v386
    %v965 = vunpack.c.l.b16 %v387
    %v966 = vunpack.c.h.b16 %v387
    %v967 = vunpack.c.l.b16 %v388
    %v968 = vunpack.c.h.b16 %v388
    %v969 = vunpack.c.l.b16 %v389
    %v970 = vunpack.c.h.b16 %v389
    %v971 = vunpack.c.l.b16 %v390
    %v972 = vunpack.c.h.b16 %v390
    %v973 = vunpack.c.l.b16 %v391
    %v974 = vunpack.c.h.b16 %v391
    %v975 = vunpack.c.l.b16 %v392
    %v976 = vunpack.c.h.b16 %v392
    %v977 = vunpack.c.l.b16 %v393
    %v978 = vunpack.c.h.b16 %v393
    %v979 = vunpack.c.l.b16 %v394
    %v980 = vunpack.c.h.b16 %v394
    %v981 = vunpack.c.l.b16 %v395
    %v982 = vunpack.c.h.b16 %v395
    %v983 = vunpack.c.l.b16 %v396
    %v984 = vunpack.c.h.b16 %v396
    %v985 = vunpack.c.l.b16 %v397
    %v986 = vunpack.c.h.b16 %v397
    %v987 = vunpack.c.l.b16 %v398
    %v988 = vunpack.c.h.b16 %v398
    %v989 = vunpack.c.l.b16 %v399
    %v990 = vunpack.c.h.b16 %v399
    %v991 = vunpack.c.l.b16 %v400
    %v992 = vunpack.c.h.b16 %v400
    %v993 = vunpack.c.l.b16 %v401
    %v994 = vunpack.c.h.b16 %v401
    %v995 = vunpack.c.l.b16 %v402
    %v996 = vunpack.c.h.b16 %v402
    %v997 = vunpack.c.l.b16 %v403
    %v998 = vunpack.c.h.b16 %v403
    %v999 = vunpack.c.l.b16 %v404
    %v1000 = vunpack.c.h.b16 %v404
    %v1001 = vunpack.c.l.b16 %v405
    %v1002 = vunpack.c.h.b16 %v405
    %v1003 = vunpack.c.l.b16 %v406
    %v1004 = vunpack.c.h.b16 %v406
    %v1005 = vunpack.c.l.b16 %v407
    %v1006 = vunpack.c.h.b16 %v407
    %v1007 = vunpack.c.l.b16 %v408
    %v1008 = vunpack.c.h.b16 %v408
    %v1009 = vunpack.c.l.b16 %v409
    %v1010 = vunpack.c.h.b16 %v409
    %v1011 = vunpack.c.l.b16 %v410
    %v1012 = vunpack.c.h.b16 %v410
    %v1013 = vunpack.c.l.b16 %v411
    %v1014 = vunpack.c.h.b16 %v411
    %v1015 = vunpack.c.l.b16 %v412
    %v1016 = vunpack.c.h.b16 %v412
    %v1017 = vunpack.c.l.b16 %v413
    %v1018 = vunpack.c.h.b16 %v413
    %v1019 = vunpack.c.l.b16 %v414
    %v1020 = vunpack.c.h.b16 %v414
    %v1021 = vunpack.c.l.b16 %v415
    %v1022 = vunpack.c.h.b16 %v415
    %v1023 = vunpack.c.l.b16 %v416
    %v1024 = vunpack.c.h.b16 %v416
    %v1025 = vunpack.c.l.b16 %v417
    %v1026 = vunpack.c.h.b16 %v417
    %v1027 = vunpack.c.l.b16 %v418
    %v1028 = vunpack.c.h.b16 %v418
    %v1029 = vunpack.c.l.b16 %v419
    %v1030 = vunpack.c.h.b16 %v419
    %v1031 = vunpack.c.l.b16 %v420
    %v1032 = vunpack.c.h.b16 %v420
    %v1033 = vunpack.c.l.b16 %v421
    %v1034 = vunpack.c.h.b16 %v421
    %v1035 = vunpack.c.l.b16 %v422
    %v1036 = vunpack.c.h.b16 %v422
    %v1037 = vunpack.c.l.b16 %v423
    %v1038 = vunpack.c.h.b16 %v423
    %v1039 = vunpack.c.l.b16 %v424
    %v1040 = vunpack.c.h.b16 %v424
    %v1041 = vunpack.c.l.b16 %v425
    %v1042 = vunpack.c.h.b16 %v425
    %v1043 = vunpack.c.l.b16 %v426
    %v1044 = vunpack.c.h.b16 %v426
    %v1045 = vunpack.c.l.b16 %v427
    %v1046 = vunpack.c.h.b16 %v427
    %v1047 = vunpack.c.l.b16 %v428
    %v1048 = vunpack.c.h.b16 %v428
    %v1049 = vunpack.c.l.b16 %v429
    %v1050 = vunpack.c.h.b16 %v429
    %v1051 = vunpack.c.l.b16 %v430
    %v1052 = vunpack.c.h.b16 %v430
    %v1053 = vunpack.c.l.b16 %v431
    %v1054 = vunpack.c.h.b16 %v431
    %v1055 = vunpack.c.l.b16 %v432
    %v1056 = vunpack.c.h.b16 %v432
    %v1057 = vunpack.c.l.b16 %v433
    %v1058 = vunpack.c.h.b16 %v433
    %v1059 = vunpack.c.l.b16 %v434
    %v1060 = vunpack.c.h.b16 %v434
    %v1061 = vunpack.c.l.b16 %v435
    %v1062 = vunpack.c.h.b16 %v435
    %v1063 = vunpack.c.l.b16 %v436
    %v1064 = vunpack.c.h.b16 %v436
    %v1065 = vunpack.c.l.b16 %v437
    %v1066 = vunpack.c.h.b16 %v437
    %v1067 = vunpack.c.l.b16 %v438
    %v1068 = vunpack.c.h.b16 %v438
    %v1069 = vunpack.c.l.b16 %v439
    %v1070 = vunpack.c.h.b16 %v439
    %v1071 = vunpack.c.l.b16 %v440
    %v1072 = vunpack.c.h.b16 %v440
    %v1073 = vunpack.c.l.b16 %v441
    %v1074 = vunpack.c.h.b16 %v441
    %v1075 = vunpack.c.l.b16 %v442
    %v1076 = vunpack.c.h.b16 %v442
    %v1077 = vunpack.c.l.b16 %v443
    %v1078 = vunpack.c.h.b16 %v443
    %v1079 = vunpack.c.l.b16 %v444
    %v1080 = vunpack.c.h.b16 %v444
    %v1081 = vunpack.c.l.b16 %v445
    %v1082 = vunpack.c.h.b16 %v445
    %v1083 = vunpack.c.l.b16 %v446
    %v1084 = vunpack.c.h.b16 %v446
    %v1085 = vunpack.c.l.b16 %v447
    %v1086 = vunpack.c.h.b16 %v447
    %v1087 = vunpack.c.l.b16 %v448
    %v1088 = vunpack.c.h.b16 %v448
    %v1089 = vunpack.c.l.b16 %v449
    %v1090 = vunpack.c.h.b16 %v449
    %v1091 = vunpack.c.l.b16 %v450
    %v1092 = vunpack.c.h.b16 %v450
    %v1093 = vunpack.c.l.b16 %v451
    %v1094 = vunpack.c.h.b16 %v451
    %v1095 = vunpack.c.l.b16 %v452
    %v1096 = vunpack.c.h.b16 %v452
    %v1097 = vunpack.c.l.b16 %v453
    %v1098 = vunpack.c.h.b16 %v453
    %v1099 = vunpack.c.l.b16 %v454
    %v1100 = vunpack.c.h.b16 %v454
    %v1101 = vunpack.c.l.b16 %v455
    %v1102 = vunpack.c.h.b16 %v455
    %v1103 = vunpack.c.l.b16 %v456
    %v1104 = vunpack.c.h.b16 %v456
    %v1105 = vunpack.c.l.b16 %v457
    %v1106 = vunpack.c.h.b16 %v457
    %v1107 = vunpack.c.l.b16 %v458
    %v1108 = vunpack.c.h.b16 %v458
    %v1109 = vunpack.c.l.b16 %v459
    %v1110 = vunpack.c.h.b16 %v459
    %v1111 = vunpack.c.l.b16 %v460
    %v1112 = vunpack.c.h.b16 %v460
    %v1113 = vunpack.c.l.b16 %v461
    %v1114 = vunpack.c.h.b16 %v461
    %v1115 = vunpack.c.l.b16 %v462
    %v1116 = vunpack.c.h.b16 %v462
    %v1117 = vunpack.c.l.b16 %v463
    %v1118 = vunpack.c.h.b16 %v463
    %v1119 = vunpack.c.l.b16 %v464
    %v1120 = vunpack.c.h.b16 %v464
    %v1121 = vunpack.c.l.b16 %v465
    %v1122 = vunpack.c.h.b16 %v465
    %v1123 = vunpack.c.l.b16 %v466
    %v1124 = vunpack.c.h.b16 %v466
    %v1125 = vunpack.c.l.b16 %v467
    %v1126 = vunpack.c.h.b16 %v467
    %v1127 = vunpack.c.l.b16 %v468
    %v1128 = vunpack.c.h.b16 %v468
    %v1129 = vunpack.c.l.b16 %v469
    %v1130 = vunpack.c.h.b16 %v469
    %v1131 = vunpack.c.l.b16 %v470
    %v1132 = vunpack.c.h.b16 %v470
    %v1133 = vunpack.c.l.b16 %v471
    %v1134 = vunpack.c.h.b16 %v471
    %v1135 = vunpack.c.l.b16 %v472
    %v1136 = vunpack.c.h.b16 %v472
    %v1137 = vunpack.c.l.b16 %v473
    %v1138 = vunpack.c.h.b16 %v473
    %v1139 = vunpack.c.l.b16 %v474
    %v1140 = vunpack.c.h.b16 %v474
    %v1141 = vunpack.c.l.b16 %v475
    %v1142 = vunpack.c.h.b16 %v475
    %v1143 = vunpack.c.l.b16 %v476
    %v1144 = vunpack.c.h.b16 %v476
    %v1145 = vunpack.c.l.b16 %v477
    %v1146 = vunpack.c.h.b16 %v477
    %v1147 = vunpack.c.l.b16 %v478
    %v1148 = vunpack.c.h.b16 %v478
    %v1149 = vunpack.c.l.b16 %v479
    %v1150 = vunpack.c.h.b16 %v479
    %v1151 = vunpack.c.l.b16 %v480
    %v1152 = vunpack.c.h.b16 %v480
    %v1153 = vunpack.c.l.b16 %v481
    %v1154 = vunpack.c.h.b16 %v481
    %v1155 = vunpack.c.l.b16 %v482
    %v1156 = vunpack.c.h.b16 %v482
    %v1157 = vunpack.c.l.b16 %v483
    %v1158 = vunpack.c.h.b16 %v483
    %v1159 = vunpack.c.l.b16 %v484
    %v1160 = vunpack.c.h.b16 %v484
    %v1161 = vunpack.c.l.b16 %v485
    %v1162 = vunpack.c.h.b16 %v485
    %v1163 = vunpack.c.l.b16 %v486
    %v1164 = vunpack.c.h.b16 %v486
    %v1165 = vunpack.c.l.b16 %v487
    %v1166 = vunpack.c.h.b16 %v487
    %v1167 = vunpack.c.l.b16 %v488
    %v1168 = vunpack.c.h.b16 %v488
    %v1169 = vunpack.c.l.b16 %v489
    %v1170 = vunpack.c.h.b16 %v489
    %v1171 = vunpack.c.l.b16 %v490
    %v1172 = vunpack.c.h.b16 %v490
    %v1173 = vunpack.c.l.b16 %v491
    %v1174 = vunpack.c.h.b16 %v491
    %v1175 = vunpack.c.l.b16 %v492
    %v1176 = vunpack.c.h.b16 %v492
    %v1177 = vunpack.c.l.b16 %v493
    %v1178 = vunpack.c.h.b16 %v493
    %v1179 = vunpack.c.l.b16 %v494
    %v1180 = vunpack.c.h.b16 %v494
    %v1181 = vunpack.c.l.b16 %v495
    %v1182 = vunpack.c.h.b16 %v495
    %v1183 = vunpack.c.l.b16 %v496
    %v1184 = vunpack.c.h.b16 %v496
    %v1185 = vunpack.c.l.b16 %v497
    %v1186 = vunpack.c.h.b16 %v497
    %v1187 = vunpack.c.l.b16 %v498
    %v1188 = vunpack.c.h.b16 %v498
    %v1189 = vunpack.c.l.b16 %v499
    %v1190 = vunpack.c.h.b16 %v499
    %v1191 = vunpack.c.l.b16 %v500
    %v1192 = vunpack.c.h.b16 %v500
    %v1193 = vunpack.c.l.b16 %v501
    %v1194 = vunpack.c.h.b16 %v501
    %v1195 = vunpack.c.l.b16 %v502
    %v1196 = vunpack.c.h.b16 %v502
    %v1197 = vunpack.c.l.b16 %v503
    %v1198 = vunpack.c.h.b16 %v503
    %v1199 = vunpack.c.l.b16 %v504
    %v1200 = vunpack.c.h.b16 %v504
    %v1201 = vunpack.c.l.b16 %v505
    %v1202 = vunpack.c.h.b16 %v505
    %v1203 = vunpack.c.l.b16 %v506
    %v1204 = vunpack.c.h.b16 %v506
    %v1205 = vunpack.c.l.b16 %v507
    %v1206 = vunpack.c.h.b16 %v507
    %v1207 = vunpack.c.l.b16 %v508
    %v1208 = vunpack.c.h.b16 %v508
    %v1209 = vunpack.c.l.b16 %v509
    %v1210 = vunpack.c.h.b16 %v509
    %v1211 = vunpack.c.l.b16 %v510
    %v1212 = vunpack.c.h.b16 %v510
    %v1213 = vunpack.c.l.b16 %v511
    %v1214 = vunpack.c.h.b16 %v511
    %v1215 = vunpack.c.l.b16 %v512
    %v1216 = vunpack.c.h.b16 %v512
    %v1217 = vunpack.c.l.b16 %v513
    %v1218 = vunpack.c.h.b16 %v513
    %v1219 = vunpack.c.l.b16 %v514
    %v1220 = vunpack.c.h.b16 %v514
    %v1221 = vunpack.c.l.b16 %v515
    %v1222 = vunpack.c.h.b16 %v515
    %v1223 = vunpack.c.l.b16 %v516
    %v1224 = vunpack.c.h.b16 %v516
    %v1225 = vunpack.c.l.b16 %v517
    %v1226 = vunpack.c.h.b16 %v517
    %v1227 = vunpack.c.l.b16 %v518
    %v1228 = vunpack.c.h.b16 %v518
    %v1229 = vunpack.c.l.b16 %v519
    %v1230 = vunpack.c.h.b16 %v519
    %v1231 = vunpack.c.l.b16 %v520
    %v1232 = vunpack.c.h.b16 %v520
    %v1233 = vunpack.c.l.b16 %v521
    %v1234 = vunpack.c.h.b16 %v521
    %v1235 = vunpack.c.l.b16 %v522
    %v1236 = vunpack.c.h.b16 %v522
    %v1237 = vunpack.c.l.b16 %v523
    %v1238 = vunpack.c.h.b16 %v523
    %v1239 = vunpack.c.l.b16 %v524
    %v1240 = vunpack.c.h.b16 %v524
    %v1241 = vunpack.c.l.b16 %v525
    %v1242 = vunpack.c.h.b16 %v525
    %v1243 = vunpack.c.l.b16 %v526
    %v1244 = vunpack.c.h.b16 %v526
    %v1245 = vunpack.c.l.b16 %v527
    %v1246 = vunpack.c.h.b16 %v527
    %v1247 = vunpack.c.l.b16 %v528
    %v1248 = vunpack.c.h.b16 %v528
    %v1249 = vunpack.c.l.b16 %v529
    %v1250 = vunpack.c.h.b16 %v529
    %v1251 = vunpack.c.l.b16 %v530
    %v1252 = vunpack.c.h.b16 %v530
    %v1253 = vunpack.c.l.b16 %v531
    %v1254 = vunpack.c.h.b16 %v531
    %v1255 = vunpack.c.l.b16 %v532
    %v1256 = vunpack.c.h.b16 %v532
    %v1257 = vunpack.c.l.b16 %v533
    %v1258 = vunpack.c.h.b16 %v533
    %v1259 = vunpack.c.l.b16 %v534
    %v1260 = vunpack.c.h.b16 %v534
    %v1261 = vunpack.c.l.b16 %v535
    %v1262 = vunpack.c.h.b16 %v535
    %v1263 = vunpack.c.l.b16 %v536
    %v1264 = vunpack.c.h.b16 %v536
    %v1265 = vunpack.c.l.b16 %v537
    %v1266 = vunpack.c.h.b16 %v537
    %v1267 = vunpack.c.l.b16 %v538
    %v1268 = vunpack.c.h.b16 %v538
    %v1269 = vunpack.c.l.b16 %v539
    %v1270 = vunpack.c.h.b16 %v539
    %v1271 = vunpack.c.l.b16 %v540
    %v1272 = vunpack.c.h.b16 %v540
    %v1273 = vunpack.c.l.b16 %v541
    %v1274 = vunpack.c.h.b16 %v541
    %v1275 = vunpack.c.l.b16 %v542
    %v1276 = vunpack.c.h.b16 %v542
    %v1277 = vunpack.c.l.b16 %v543
    %v1278 = vunpack.c.h.b16 %v543
    %v1279 = vunpack.c.l.b16 %v544
    %v1280 = vunpack.c.h.b16 %v544
    %v1281 = vunpack.c.l.b16 %v545
    %v1282 = vunpack.c.h.b16 %v545
    %v1283 = vunpack.c.l.b16 %v546
    %v1284 = vunpack.c.h.b16 %v546
    %v1285 = vunpack.c.l.b16 %v547
    %v1286 = vunpack.c.h.b16 %v547
    %v1287 = vunpack.c.l.b16 %v548
    %v1288 = vunpack.c.h.b16 %v548
    %v1289 = vunpack.c.l.b16 %v549
    %v1290 = vunpack.c.h.b16 %v549
    %v1291 = vunpack.c.l.b16 %v550
    %v1292 = vunpack.c.h.b16 %v550
    %v1293 = vunpack.c.l.b16 %v551
    %v1294 = vunpack.c.h.b16 %v551
    %v1295 = vunpack.c.l.b16 %v552
    %v1296 = vunpack.c.h.b16 %v552
    %v1297 = vunpack.c.l.b16 %v553
    %v1298 = vunpack.c.h.b16 %v553
    %v1299 = vunpack.c.l.b16 %v554
    %v1300 = vunpack.c.h.b16 %v554
    %v1301 = vunpack.c.l.b16 %v555
    %v1302 = vunpack.c.h.b16 %v555
    %v1303 = vunpack.c.l.b16 %v556
    %v1304 = vunpack.c.h.b16 %v556
    %v1305 = vunpack.c.l.b16 %v557
    %v1306 = vunpack.c.h.b16 %v557
    %v1307 = vunpack.c.l.b16 %v558
    %v1308 = vunpack.c.h.b16 %v558
    %v1309 = vunpack.c.l.b16 %v559
    %v1310 = vunpack.c.h.b16 %v559
    %v1311 = vunpack.c.l.b16 %v560
    %v1312 = vunpack.c.h.b16 %v560
    %v1313 = vunpack.c.l.b16 %v561
    %v1314 = vunpack.c.h.b16 %v561
    %v1315 = vunpack.c.l.b16 %v562
    %v1316 = vunpack.c.h.b16 %v562
    %v1317 = vunpack.c.l.b16 %v563
    %v1318 = vunpack.c.h.b16 %v563
    %v1319 = vunpack.c.l.b16 %v564
    %v1320 = vunpack.c.h.b16 %v564
    %v1321 = vunpack.c.l.b16 %v565
    %v1322 = vunpack.c.h.b16 %v565
    %v1323 = vunpack.c.l.b16 %v566
    %v1324 = vunpack.c.h.b16 %v566
    %v1325 = vunpack.c.l.b16 %v567
    %v1326 = vunpack.c.h.b16 %v567
    %v1327 = vunpack.c.l.b16 %v568
    %v1328 = vunpack.c.h.b16 %v568
    %v1329 = vunpack.c.l.b16 %v569
    %v1330 = vunpack.c.h.b16 %v569
    %v1331 = vunpack.c.l.b16 %v570
    %v1332 = vunpack.c.h.b16 %v570
    %v1333 = vunpack.c.l.b16 %v571
    %v1334 = vunpack.c.h.b16 %v571
    %v1335 = vunpack.c.l.b16 %v572
    %v1336 = vunpack.c.h.b16 %v572
    %v1337 = vunpack.c.l.b16 %v573
    %v1338 = vunpack.c.h.b16 %v573
    %v1339 = vunpack.c.l.b16 %v574
    %v1340 = vunpack.c.h.b16 %v574
    %v1341 = vunpack.c.l.b16 %v575
    %v1342 = vunpack.c.h.b16 %v575
    %v1343 = vunpack.c.l.b16 %v576
    %v1344 = vunpack.c.h.b16 %v576
    %v1345 = vunpack.c.l.b16 %v577
    %v1346 = vunpack.c.h.b16 %v577
    %v1347 = vunpack.c.l.b16 %v578
    %v1348 = vunpack.c.h.b16 %v578
    %v1349 = vunpack.c.l.b16 %v579
    %v1350 = vunpack.c.h.b16 %v579
    %v1351 = vunpack.c.l.b16 %v580
    %v1352 = vunpack.c.h.b16 %v580
    %v1353 = vunpack.c.l.b16 %v581
    %v1354 = vunpack.c.h.b16 %v581
    %v1355 = vunpack.c.l.b16 %v582
    %v1356 = vunpack.c.h.b16 %v582
    %v1357 = vunpack.c.l.b16 %v583
    %v1358 = vunpack.c.h.b16 %v583
    %v1359 = vunpack.c.l.b16 %v584
    %v1360 = vunpack.c.h.b16 %v584
    %v1361 = vunpack.c.l.b16 %v585
    %v1362 = vunpack.c.h.b16 %v585
    %v1363 = vunpack.c.l.b16 %v586
    %v1364 = vunpack.c.h.b16 %v586
    %v1365 = vunpack.c.l.b16 %v587
    %v1366 = vunpack.c.h.b16 %v587
    %v1367 = vunpack.c.l.b16 %v588
    %v1368 = vunpack.c.h.b16 %v588
    %v1369 = vunpack.c.l.b16 %v589
    %v1370 = vunpack.c.h.b16 %v589
    %v1371 = vunpack.c.l.b16 %v590
    %v1372 = vunpack.c.h.b16 %v590
    %v1373 = vunpack.c.l.b16 %v591
    %v1374 = vunpack.c.h.b16 %v591
    %v1375 = vunpack.c.l.b16 %v592
    %v1376 = vunpack.c.h.b16 %v592
    %v1377 = vunpack.c.l.b16 %v593
    %v1378 = vunpack.c.h.b16 %v593
    %v1379 = vunpack.c.l.b16 %v594
    %v1380 = vunpack.c.h.b16 %v594
    %v1381 = vunpack.c.l.b16 %v595
    %v1382 = vunpack.c.h.b16 %v595
    %v1383 = vunpack.c.l.b16 %v596
    %v1384 = vunpack.c.h.b16 %v596
    %v1385 = vunpack.c.l.b16 %v597
    %v1386 = vunpack.c.h.b16 %v597
    %v1387 = vunpack.c.l.b16 %v598
    %v1388 = vunpack.c.h.b16 %v598
    %v1389 = vunpack.c.l.b16 %v599
    %v1390 = vunpack.c.h.b16 %v599
    %v1391 = vunpack.c.l.b16 %v600
    %v1392 = vunpack.c.h.b16 %v600
    %v1393 = vunpack.c.l.b16 %v601
    %v1394 = vunpack.c.h.b16 %v601
    %v1395 = vunpack.c.l.b16 %v602
    %v1396 = vunpack.c.h.b16 %v602
    %v1397 = vunpack.c.l.b16 %v603
    %v1398 = vunpack.c.h.b16 %v603
    %v1399 = vunpack.c.l.b16 %v604
    %v1400 = vunpack.c.h.b16 %v604
    %v1401 = vunpack.c.l.b16 %v605
    %v1402 = vunpack.c.h.b16 %v605
    %v1403 = vunpack.c.l.b16 %v606
    %v1404 = vunpack.c.h.b16 %v606
    %v1405 = vunpack.c.l.b16 %v607
    %v1406 = vunpack.c.h.b16 %v607
    %v1407 = vunpack.c.l.b16 %v608
    %v1408 = vunpack.c.h.b16 %v608
    %v1409 = vunpack.c.l.b16 %v609
    %v1410 = vunpack.c.h.b16 %v609
    %v1411 = vunpack.c.l.b16 %v610
    %v1412 = vunpack.c.h.b16 %v610
    %v1413 = vunpack.c.l.b16 %v611
    %v1414 = vunpack.c.h.b16 %v611
    %v1415 = vunpack.c.l.b16 %v612
    %v1416 = vunpack.c.h.b16 %v612
    %v1417 = vunpack.c.l.b16 %v613
    %v1418 = vunpack.c.h.b16 %v613
    %v1419 = vunpack.c.l.b16 %v614
    %v1420 = vunpack.c.h.b16 %v614
    %v1421 = vunpack.c.l.b16 %v615
    %v1422 = vunpack.c.h.b16 %v615
    %v1423 = vunpack.c.l.b16 %v616
    %v1424 = vunpack.c.h.b16 %v616
    %v1425 = vunpack.c.l.b16 %v617
    %v1426 = vunpack.c.h.b16 %v617
    %v1427 = vunpack.c.l.b16 %v618
    %v1428 = vunpack.c.h.b16 %v618
    %v1429 = vpack.c.b16 %v925, %v917
    %v1430 = vpack.c.b16 %v926, %v918
    %v1431 = vpack.c.b16 %v927, %v919
    %v1432 = vpack.c.b16 %v928, %v920
    %v1433 = vpack.c.b16 %v929, %v921
    %v1434 = vpack.c.b16 %v930, %v922
    %v1435 = vpack.c.b16 %v931, %v923
    %v1436 = vpack.c.b16 %v932, %v924
    %v1437 = vpack.c.b16 %v941, %v933
    %v1438 = vpack.c.b16 %v942, %v934
    %v1439 = vpack.c.b16 %v943, %v935
    %v1440 = vpack.c.b16 %v944, %v936
    %v1441 = vpack.c.b16 %v945, %v937
    %v1442 = vpack.c.b16 %v946, %v938
    %v1443 = vpack.c.b16 %v947, %v939
    %v1444 = vpack.c.b16 %v948, %v940
    %v1445 = vpack.c.b16 %v957, %v949
    %v1446 = vpack.c.b16 %v958, %v950
    %v1447 = vpack.c.b16 %v959, %v951
    %v1448 = vpack.c.b16 %v960, %v952
    %v1449 = vpack.c.b16 %v961, %v953
    %v1450 = vpack.c.b16 %v962, %v954
    %v1451 = vpack.c.b16 %v963, %v955
    %v1452 = vpack.c.b16 %v964, %v956
    %v1453 = vpack.c.b16 %v973, %v965
    %v1454 = vpack.c.b16 %v974, %v966
    %v1455 = vpack.c.b16 %v975, %v967
    %v1456 = vpack.c.b16 %v976, %v968
    %v1457 = vpack.c.b16 %v977, %v969
    %v1458 = vpack.c.b16 %v978, %v970
    %v1459 = vpack.c.b16 %v979, %v971
    %v1460 = vpack.c.b16 %v980, %v972
    %v1461 = vpack.c.b16 %v989, %v981
    %v1462 = vpack.c.b16 %v990, %v982
    %v1463 = vpack.c.b16 %v991, %v983
    %v1464 = vpack.c.b16 %v992, %v984
    %v1465 = vpack.c.b16 %v993, %v985
    %v1466 = vpack.c.b16 %v994, %v986
    %v1467 = vpack.c.b16 %v995, %v987
    %v1468 = vpack.c.b16 %v996, %v988
    %v1469 = vpack.c.b16 %v1005, %v997
    %v1470 = vpack.c.b16 %v1006, %v998
    %v1471 = vpack.c.b16 %v1007, %v999
    %v1472 = vpack.c.b16 %v1008, %v1000
    %v1473 = vpack.c.b16 %v1009, %v1001
    %v1474 = vpack.c.b16 %v1010, %v1002
    %v1475 = vpack.c.b16 %v1011, %v1003
    %v1476 = vpack.c.b16 %v1012, %v1004
    %v1477 = vpack.c.b16 %v1021, %v1013
    %v1478 = vpack.c.b16 %v1022, %v1014
    %v1479 = vpack.c.b16 %v1023, %v1015
    %v1480 = vpack.c.b16 %v1024, %v1016
    %v1481 = vpack.c.b16 %v1025, %v1017
    %v1482 = vpack.c.b16 %v1026, %v1018
    %v1483 = vpack.c.b16 %v1027, %v1019
    %v1484 = vpack.c.b16 %v1028, %v1020
    %v1485 = vpack.c.b16 %v1037, %v1029
    %v1486 = vpack.c.b16 %v1038, %v1030
    %v1487 = vpack.c.b16 %v1039, %v1031
    %v1488 = vpack.c.b16 %v1040, %v1032
    %v1489 = vpack.c.b16 %v1041, %v1033
    %v1490 = vpack.c.b16 %v1042, %v1034
    %v1491 = vpack.c.b16 %v1043, %v1035
    %v1492 = vpack.c.b16 %v1044, %v1036
    %v1493 = vpack.c.b16 %v1053, %v1045
    %v1494 = vpack.c.b16 %v1054, %v1046
    %v1495 = vpack.c.b16 %v1055, %v1047
    %v1496 = vpack.c.b16 %v1056, %v1048
    %v1497 = vpack.c.b16 %v1057, %v1049
    %v1498 = vpack.c.b16 %v1058, %v1050
    %v1499 = vpack.c.b16 %v1059, %v1051
    %v1500 = vpack.c.b16 %v1060, %v1052
    %v1501 = vpack.c.b16 %v1069, %v1061
    %v1502 = vpack.c.b16 %v1070, %v1062
    %v1503 = vpack.c.b16 %v1071, %v1063
    %v1504 = vpack.c.b16 %v1072, %v1064
    %v1505 = vpack.c.b16 %v1073, %v1065
    %v1506 = vpack.c.b16 %v1074, %v1066
    %v1507 = vpack.c.b16 %v1075, %v1067
    %v1508 = vpack.c.b16 %v1076, %v1068
    %v1509 = vpack.c.b16 %v1085, %v1077
    %v1510 = vpack.c.b16 %v1086, %v1078
    %v1511 = vpack.c.b16 %v1087, %v1079
    %v1512 = vpack.c.b16 %v1088, %v1080
    %v1513 = vpack.c.b16 %v1089, %v1081
    %v1514 = vpack.c.b16 %v1090, %v1082
    %v1515 = vpack.c.b16 %v1091, %v1083
    %v1516 = vpack.c.b16 %v1092, %v1084
    %v1517 = vpack.c.b16 %v1101, %v1093
    %v1518 = vpack.c.b16 %v1102, %v1094
    %v1519 = vpack.c.b16 %v1103, %v1095
    %v1520 = vpack.c.b16 %v1104, %v1096
    %v1521 = vpack.c.b16 %v1105, %v1097
    %v1522 = vpack.c.b16 %v1106, %v1098
    %v1523 = vpack.c.b16 %v1107, %v1099
    %v1524 = vpack.c.b16 %v1108, %v1100
    %v1525 = vpack.c.b16 %v1117, %v1109
    %v1526 = vpack.c.b16 %v1118, %v1110
    %v1527 = vpack.c.b16 %v1119, %v1111
    %v1528 = vpack.c.b16 %v1120, %v1112
    %v1529 = vpack.c.b16 %v1121, %v1113
    %v1530 = vpack.c.b16 %v1122, %v1114
    %v1531 = vpack.c.b16 %v1123, %v1115
    %v1532 = vpack.c.b16 %v1124, %v1116
    %v1533 = vpack.c.b16 %v1133, %v1125
    %v1534 = vpack.c.b16 %v1134, %v1126
    %v1535 = vpack.c.b16 %v1135, %v1127
    %v1536 = vpack.c.b16 %v1136, %v1128
    %v1537 = vpack.c.b16 %v1137, %v1129
    %v1538 = vpack.c.b16 %v1138, %v1130
    %v1539 = vpack.c.b16 %v1139, %v1131
    %v1540 = vpack.c.b16 %v1140, %v1132
    %v1541 = vpack.c.b16 %v1149, %v1141
    %v1542 = vpack.c.b16 %v1150, %v1142
    %v1543 = vpack.c.b16 %v1151, %v1143
    %v1544 = vpack.c.b16 %v1152, %v1144
    %v1545 = vpack.c.b16 %v1153, %v1145
    %v1546 = vpack.c.b16 %v1154, %v1146
    %v1547 = vpack.c.b16 %v1155, %v1147
    %v1548 = vpack.c.b16 %v1156, %v1148
    %v1549 = vpack.c.b16 %v1165, %v1157
    %v1550 = vpack.c.b16 %v1166, %v1158
    %v1551 = vpack.c.b16 %v1167, %v1159
    %v1552 = vpack.c.b16 %v1168, %v1160
    %v1553 = vpack.c.b16 %v1169, %v1161
    %v1554 = vpack.c.b16 %v1170, %v1162
    %v1555 = vpack.c.b16 %v1171, %v1163
    %v1556 = vpack.c.b16 %v1172, %v1164
    %v1557 = vpack.c.b16 %v1181, %v1173
    %v1558 = vpack.c.b16 %v1182, %v1174
    %v1559 = vpack.c.b16 %v1183, %v1175
    %v1560 = vpack.c.b16 %v1184, %v1176
    %v1561 = vpack.c.b16 %v1185, %v1177
    %v1562 = vpack.c.b16 %v1186, %v1178
    %v1563 = vpack.c.b16 %v1187, %v1179
    %v1564 = vpack.c.b16 %v1188, %v1180
    %v1565 = vpack.c.b16 %v1197, %v1189
    %v1566 = vpack.c.b16 %v1198, %v1190
    %v1567 = vpack.c.b16 %v1199, %v1191
    %v1568 = vpack.c.b16 %v1200, %v1192
    %v1569 = vpack.c.b16 %v1201, %v1193
    %v1570 = vpack.c.b16 %v1202, %v1194
    %v1571 = vpack.c.b16 %v1203, %v1195
    %v1572 = vpack.c.b16 %v1204, %v1196
    %v1573 = vpack.c.b16 %v1213, %v1205
    %v1574 = vpack.c.b16 %v1214, %v1206
    %v1575 = vpack.c.b16 %v1215, %v1207
    %v1576 = vpack.c.b16 %v1216, %v1208
    %v1577 = vpack.c.b16 %v1217, %v1209
    %v1578 = vpack.c.b16 %v1218, %v1210
    %v1579 = vpack.c.b16 %v1219, %v1211
    %v1580 = vpack.c.b16 %v1220, %v1212
    %v1581 = vpack.c.b16 %v1229, %v1221
    %v1582 = vpack.c.b16 %v1230, %v1222
    %v1583 = vpack.c.b16 %v1231, %v1223
    %v1584 = vpack.c.b16 %v1232, %v1224
    %v1585 = vpack.c.b16 %v1233, %v1225
    %v1586 = vpack.c.b16 %v1234, %v1226
    %v1587 = vpack.c.b16 %v1235, %v1227
    %v1588 = vpack.c.b16 %v1236, %v1228
    %v1589 = vpack.c.b16 %v1245, %v1237
    %v1590 = vpack.c.b16 %v1246, %v1238
    %v1591 = vpack.c.b16 %v1247, %v1239
    %v1592 = vpack.c.b16 %v1248, %v1240
    %v1593 = vpack.c.b16 %v1249, %v1241
    %v1594 = vpack.c.b16 %v1250, %v1242
    %v1595 = vpack.c.b16 %v1251, %v1243
    %v1596 = vpack.c.b16 %v1252, %v1244
    %v1597 = vpack.c.b16 %v1261, %v1253
    %v1598 = vpack.c.b16 %v1262, %v1254
    %v1599 = vpack.c.b16 %v1263, %v1255
    %v1600 = vpack.c.b16 %v1264, %v1256
    %v1601 = vpack.c.b16 %v1265, %v1257
    %v1602 = vpack.c.b16 %v1266, %v1258
    %v1603 = vpack.c.b16 %v1267, %v1259
    %v1604 = vpack.c.b16 %v1268, %v1260
    %v1605 = vpack.c.b16 %v1277, %v1269
    %v1606 = vpack.c.b16 %v1278, %v1270
    %v1607 = vpack.c.b16 %v1279, %v1271
    %v1608 = vpack.c.b16 %v1280, %v1272
    %v1609 = vpack.c.b16 %v1281, %v1273
    %v1610 = vpack.c.b16 %v1282, %v1274
    %v1611 = vpack.c.b16 %v1283, %v1275
    %v1612 = vpack.c.b16 %v1284, %v1276
    %v1613 = vpack.c.b16 %v1293, %v1285
    %v1614 = vpack.c.b16 %v1294, %v1286
    %v1615 = vpack.c.b16 %v1295, %v1287
    %v1616 = vpack.c.b16 %v1296, %v1288
    %v1617 = vpack.c.b16 %v1297, %v1289
    %v1618 = vpack.c.b16 %v1298, %v1290
    %v1619 = vpack.c.b16 %v1299, %v1291
    %v1620 = vpack.c.b16 %v1300, %v1292
    %v1621 = vpack.c.b16 %v1309, %v1301
    %v1622 = vpack.c.b16 %v1310, %v1302
    %v1623 = vpack.c.b16 %v1311, %v1303
    %v1624 = vpack.c.b16 %v1312, %v1304
    %v1625 = vpack.c.b16 %v1313, %v1305
    %v1626 = vpack.c.b16 %v1314, %v1306
    %v1627 = vpack.c.b16 %v1315, %v1307
    %v1628 = vpack.c.b16 %v1316, %v1308
    %v1629 = vpack.c.b16 %v1325, %v1317
    %v1630 = vpack.c.b16 %v1326, %v1318
    %v1631 = vpack.c.b16 %v1327, %v1319
    %v1632 = vpack.c.b16 %v1328, %v1320
    %v1633 = vpack.c.b16 %v1329, %v1321
    %v1634 = vpack.c.b16 %v1330, %v1322
    %v1635 = vpack.c.b16 %v1331, %v1323
    %v1636 = vpack.c.b16 %v1332, %v1324
    %v1637 = vpack.c.b16 %v1341, %v1333
    %v1638 = vpack.c.b16 %v1342, %v1334
    %v1639 = vpack.c.b16 %v1343, %v1335
    %v1640 = vpack.c.b16 %v1344, %v1336
    %v1641 = vpack.c.b16 %v1345, %v1337
    %v1642 = vpack.c.b16 %v1346, %v1338
    %v1643 = vpack.c.b16 %v1347, %v1339
    %v1644 = vpack.c.b16 %v1348, %v1340
    %v1645 = vpack.c.b16 %v1357, %v1349
    %v1646 = vpack.c.b16 %v1358, %v1350
    %v1647 = vpack.c.b16 %v1359, %v1351
    %v1648 = vpack.c.b16 %v1360, %v1352
    %v1649 = vpack.c.b16 %v1361, %v1353
    %v1650 = vpack.c.b16 %v1362, %v1354
    %v1651 = vpack.c.b16 %v1363, %v1355
    %v1652 = vpack.c.b16 %v1364, %v1356
    %v1653 = vpack.c.b16 %v1373, %v1365
    %v1654 = vpack.c.b16 %v1374, %v1366
    %v1655 = vpack.c.b16 %v1375, %v1367
    %v1656 = vpack.c.b16 %v1376, %v1368
    %v1657 = vpack.c.b16 %v1377, %v1369
    %v1658 = vpack.c.b16 %v1378, %v1370
    %v1659 = vpack.c.b16 %v1379, %v1371
    %v1660 = vpack.c.b16 %v1380, %v1372
    %v1661 = vpack.c.b16 %v1389, %v1381
    %v1662 = vpack.c.b16 %v1390, %v1382
    %v1663 = vpack.c.b16 %v1391, %v1383
    %v1664 = vpack.c.b16 %v1392, %v1384
    %v1665 = vpack.c.b16 %v1393, %v1385
    %v1666 = vpack.c.b16 %v1394, %v1386
    %v1667 = vpack.c.b16 %v1395, %v1387
    %v1668 = vpack.c.b16 %v1396, %v1388
    %v1669 = vpack.c.b16 %v1405, %v1397
    %v1670 = vpack.c.b16 %v1406, %v1398
    %v1671 = vpack.c.b16 %v1407, %v1399
    %v1672 = vpack.c.b16 %v1408, %v1400
    %v1673 = vpack.c.b16 %v1409, %v1401
    %v1674 = vpack.c.b16 %v1410, %v1402
    %v1675 = vpack.c.b16 %v1411, %v1403
    %v1676 = vpack.c.b16 %v1412, %v1404
    %v1677 = vpack.c.b16 %v1421, %v1413
    %v1678 = vpack.c.b16 %v1422, %v1414
    %v1679 = vpack.c.b16 %v1423, %v1415
    %v1680 = vpack.c.b16 %v1424, %v1416
    %v1681 = vpack.c.b16 %v1425, %v1417
    %v1682 = vpack.c.b16 %v1426, %v1418
    %v1683 = vpack.c.b16 %v1427, %v1419
    %v1684 = vpack.c.b16 %v1428, %v1420
    %1941 = vmatprep.subr.bf16.mxu0 %v1486
    %1942 = vmatpush1.bf16.msra.mxu0 %v1485
    %1943 = vmatprep.subr.bf16.mxu0 %v1478
    %1944 = vmatpush1.bf16.msra.mxu0 %v1477
    %1945 = vmatprep.subr.bf16.mxu0 %v1470
    %1946 = vmatpush1.bf16.msra.mxu0 %v1469
    %1947 = vmatprep.subr.bf16.mxu0 %v1462
    %1948 = vmatpush1.bf16.msra.mxu0 %v1461
    %1949 = vmatprep.subr.bf16.mxu0 %v1454
    %1950 = vmatpush1.bf16.msra.mxu0 %v1453
    %1951 = vmatprep.subr.bf16.mxu0 %v1446
    %1952 = vmatpush1.bf16.msra.mxu0 %v1445
    %1953 = vmatprep.subr.bf16.mxu0 %v1438
    %1954 = vmatpush1.bf16.msra.mxu0 %v1437
    %1955 = vmatprep.subr.bf16.mxu0 %v1430
    %1956 = vmatpush1.bf16.msra.mxu0 %v1429
    %1957 = vmatprep.subr.bf16.mxu0 %v1550
    %1958 = vmatpush2.bf16.msra.mxu0 %v1549
    %1959 = vmatprep.subr.bf16.mxu0 %v1542
    %1960 = vmatpush2.bf16.msra.mxu0 %v1541
    %1961 = vmatprep.subr.bf16.mxu0 %v1534
    %1962 = vmatpush2.bf16.msra.mxu0 %v1533
    %1963 = vmatprep.subr.bf16.mxu0 %v1526
    %1964 = vmatpush2.bf16.msra.mxu0 %v1525
    %1965 = vmatprep.subr.bf16.mxu0 %v1518
    %1966 = vmatpush2.bf16.msra.mxu0 %v1517
    %1967 = vmatprep.subr.bf16.mxu0 %v1510
    %1968 = vmatpush2.bf16.msra.mxu0 %v1509
    %1969 = vmatprep.subr.bf16.mxu0 %v1502
    %1970 = vmatpush2.bf16.msra.mxu0 %v1501
    %1971 = vmatprep.subr.bf16.mxu0 %v1494
    %1972 = vmatpush2.bf16.msra.mxu0 %v1493
    %1973 = vmatprep.mubr.bf16.mxu0 %v348
    %1974 = vmatmul.mubr.bf16.gmra.mxu0 %v347
    %v1975 = vpop.f32.mrf.mxu0
    %v1976 = vadd.f32 %v624, %v1975
    %v1977 = vpop.f32.mrf.mxu0
    %v1978 = vadd.f32 %v628, %v1977
    %v1979 = vpop.f32.mrf.mxu0
    %v1980 = vadd.f32 %v624, %v1979
    %v1981 = vpop.f32.mrf.mxu0
    %v1982 = vadd.f32 %v628, %v1981
    %1983 = vmatprep.mubr.bf16.mxu0 %v352
    %1984 = vmatmul.mubr.bf16.gmra.mxu0 %v351
    %v1985 = vpop.f32.mrf.mxu0
    %v1986 = vadd.f32 %v624, %v1985
    %v1987 = vpop.f32.mrf.mxu0
    %v1988 = vadd.f32 %v628, %v1987
    %v1989 = vpop.f32.mrf.mxu0
    %v1990 = vadd.f32 %v624, %v1989
    %v1991 = vpop.f32.mrf.mxu0
    %v1992 = vadd.f32 %v628, %v1991
    %1993 = vmatprep.mubr.bf16.mxu0 %v356
    %1994 = vmatmul.mubr.bf16.gmra.mxu0 %v355
    %v1995 = vpop.f32.mrf.mxu0
    %v1996 = vadd.f32 %v624, %v1995
    %v1997 = vpop.f32.mrf.mxu0
    %v1998 = vadd.f32 %v628, %v1997
    %v1999 = vpop.f32.mrf.mxu0
    %v2000 = vadd.f32 %v624, %v1999
    %v2001 = vpop.f32.mrf.mxu0
    %v2002 = vadd.f32 %v628, %v2001
    %2003 = vmatprep.mubr.bf16.mxu0 %v360
    %2004 = vmatmul.mubr.bf16.gmra.mxu0 %v359
    %v2005 = vpop.f32.mrf.mxu0
    %v2006 = vadd.f32 %v624, %v2005
    %v2007 = vpop.f32.mrf.mxu0
    %v2008 = vadd.f32 %v628, %v2007
    %v2009 = vpop.f32.mrf.mxu0
    %v2010 = vpop.f32.mrf.mxu0
    %2011 = vdwg.mxu0
    %2012 = vmatprep.subr.bf16.mxu0 %v1614
    %2013 = vmatpush1.bf16.msra.mxu0 %v1613
    %2014 = vmatprep.subr.bf16.mxu0 %v1606
    %2015 = vmatpush1.bf16.msra.mxu0 %v1605
    %2016 = vmatprep.subr.bf16.mxu0 %v1598
    %2017 = vmatpush1.bf16.msra.mxu0 %v1597
    %2018 = vmatprep.subr.bf16.mxu0 %v1590
    %2019 = vmatpush1.bf16.msra.mxu0 %v1589
    %2020 = vmatprep.subr.bf16.mxu0 %v1582
    %2021 = vmatpush1.bf16.msra.mxu0 %v1581
    %2022 = vmatprep.subr.bf16.mxu0 %v1574
    %2023 = vmatpush1.bf16.msra.mxu0 %v1573
    %2024 = vmatprep.subr.bf16.mxu0 %v1566
    %2025 = vmatpush1.bf16.msra.mxu0 %v1565
    %2026 = vmatprep.subr.bf16.mxu0 %v1558
    %2027 = vmatpush1.bf16.msra.mxu0 %v1557
    %2028 = vmatprep.subr.bf16.mxu0 %v1678
    %2029 = vmatpush2.bf16.msra.mxu0 %v1677
    %2030 = vmatprep.subr.bf16.mxu0 %v1670
    %2031 = vmatpush2.bf16.msra.mxu0 %v1669
    %2032 = vmatprep.subr.bf16.mxu0 %v1662
    %2033 = vmatpush2.bf16.msra.mxu0 %v1661
    %2034 = vmatprep.subr.bf16.mxu0 %v1654
    %2035 = vmatpush2.bf16.msra.mxu0 %v1653
    %2036 = vmatprep.subr.bf16.mxu0 %v1646
    %2037 = vmatpush2.bf16.msra.mxu0 %v1645
    %2038 = vmatprep.subr.bf16.mxu0 %v1638
    %2039 = vmatpush2.bf16.msra.mxu0 %v1637
    %2040 = vmatprep.subr.bf16.mxu0 %v1630
    %2041 = vmatpush2.bf16.msra.mxu0 %v1629
    %2042 = vmatprep.subr.bf16.mxu0 %v1622
    %2043 = vmatpush2.bf16.msra.mxu0 %v1621
    %2044 = vmatprep.mubr.bf16.mxu0 %v350
    %2045 = vmatmul.mubr.bf16.gmra.mxu0 %v349
    %v2046 = vpop.f32.mrf.mxu0
    %v2047 = vadd.f32 %v1976, %v2046
    %v2048 = vpop.f32.mrf.mxu0
    %v2049 = vadd.f32 %v1978, %v2048
    %v2050 = vpop.f32.mrf.mxu0
    %v2051 = vadd.f32 %v1980, %v2050
    %v2052 = vpop.f32.mrf.mxu0
    %v2053 = vadd.f32 %v1982, %v2052
    %2054 = vmatprep.mubr.bf16.mxu0 %v354
    %2055 = vmatmul.mubr.bf16.gmra.mxu0 %v353
    %v2056 = vpop.f32.mrf.mxu0
    %v2057 = vadd.f32 %v1986, %v2056
    %v2058 = vpop.f32.mrf.mxu0
    %v2059 = vadd.f32 %v1988, %v2058
    %v2060 = vpop.f32.mrf.mxu0
    %v2061 = vadd.f32 %v1990, %v2060
    %v2062 = vpop.f32.mrf.mxu0
    %v2063 = vadd.f32 %v1992, %v2062
    %2064 = vmatprep.mubr.bf16.mxu0 %v358
    %2065 = vmatmul.mubr.bf16.gmra.mxu0 %v357
    %v2066 = vpop.f32.mrf.mxu0
    %v2067 = vadd.f32 %v1996, %v2066
    %v2068 = vpop.f32.mrf.mxu0
    %v2069 = vadd.f32 %v1998, %v2068
    %v2070 = vpop.f32.mrf.mxu0
    %v2071 = vadd.f32 %v2000, %v2070
    %v2072 = vpop.f32.mrf.mxu0
    %v2073 = vadd.f32 %v2002, %v2072
    %2074 = vmatprep.mubr.bf16.mxu0 %v362
    %2075 = vmatmul.mubr.bf16.gmra.mxu0 %v361
    %v2076 = vpop.f32.mrf.mxu0
    %v2077 = vadd.f32 %v2006, %v2076
    %v2078 = vpop.f32.mrf.mxu0
    %v2079 = vadd.f32 %v2008, %v2078
    %v2080 = vpop.f32.mrf.mxu0
    %v2081 = vpop.f32.mrf.mxu0
    %2082 = vdwg.mxu0
    %2083 = vmatprep.subr.bf16.mxu0 %v1488
    %2084 = vmatpush1.bf16.msra.mxu0 %v1487
    %2085 = vmatprep.subr.bf16.mxu0 %v1480
    %2086 = vmatpush1.bf16.msra.mxu0 %v1479
    %2087 = vmatprep.subr.bf16.mxu0 %v1472
    %2088 = vmatpush1.bf16.msra.mxu0 %v1471
    %2089 = vmatprep.subr.bf16.mxu0 %v1464
    %2090 = vmatpush1.bf16.msra.mxu0 %v1463
    %2091 = vmatprep.subr.bf16.mxu0 %v1456
    %2092 = vmatpush1.bf16.msra.mxu0 %v1455
    %2093 = vmatprep.subr.bf16.mxu0 %v1448
    %2094 = vmatpush1.bf16.msra.mxu0 %v1447
    %2095 = vmatprep.subr.bf16.mxu0 %v1440
    %2096 = vmatpush1.bf16.msra.mxu0 %v1439
    %2097 = vmatprep.subr.bf16.mxu0 %v1432
    %2098 = vmatpush1.bf16.msra.mxu0 %v1431
    %2099 = vmatprep.subr.bf16.mxu0 %v1552
    %2100 = vmatpush2.bf16.msra.mxu0 %v1551
    %2101 = vmatprep.subr.bf16.mxu0 %v1544
    %2102 = vmatpush2.bf16.msra.mxu0 %v1543
    %2103 = vmatprep.subr.bf16.mxu0 %v1536
    %2104 = vmatpush2.bf16.msra.mxu0 %v1535
    %2105 = vmatprep.subr.bf16.mxu0 %v1528
    %2106 = vmatpush2.bf16.msra.mxu0 %v1527
    %2107 = vmatprep.subr.bf16.mxu0 %v1520
    %2108 = vmatpush2.bf16.msra.mxu0 %v1519
    %2109 = vmatprep.subr.bf16.mxu0 %v1512
    %2110 = vmatpush2.bf16.msra.mxu0 %v1511
    %2111 = vmatprep.subr.bf16.mxu0 %v1504
    %2112 = vmatpush2.bf16.msra.mxu0 %v1503
    %2113 = vmatprep.subr.bf16.mxu0 %v1496
    %2114 = vmatpush2.bf16.msra.mxu0 %v1495
    %2115 = vmatprep.mubr.bf16.mxu0 %v348
    %2116 = vmatmul.mubr.bf16.gmra.mxu0 %v347
    %v2117 = vpop.f32.mrf.mxu0
    %v2118 = vadd.f32 %v632, %v2117
    %v2119 = vpop.f32.mrf.mxu0
    %v2120 = vadd.f32 %v636, %v2119
    %v2121 = vpop.f32.mrf.mxu0
    %v2122 = vadd.f32 %v632, %v2121
    %v2123 = vpop.f32.mrf.mxu0
    %v2124 = vadd.f32 %v636, %v2123
    %2125 = vmatprep.mubr.bf16.mxu0 %v352
    %2126 = vmatmul.mubr.bf16.gmra.mxu0 %v351
    %v2127 = vpop.f32.mrf.mxu0
    %v2128 = vadd.f32 %v632, %v2127
    %v2129 = vpop.f32.mrf.mxu0
    %v2130 = vadd.f32 %v636, %v2129
    %v2131 = vpop.f32.mrf.mxu0
    %v2132 = vadd.f32 %v632, %v2131
    %v2133 = vpop.f32.mrf.mxu0
    %v2134 = vadd.f32 %v636, %v2133
    %2135 = vmatprep.mubr.bf16.mxu0 %v356
    %2136 = vmatmul.mubr.bf16.gmra.mxu0 %v355
    %v2137 = vpop.f32.mrf.mxu0
    %v2138 = vadd.f32 %v632, %v2137
    %v2139 = vpop.f32.mrf.mxu0
    %v2140 = vadd.f32 %v636, %v2139
    %v2141 = vpop.f32.mrf.mxu0
    %v2142 = vadd.f32 %v632, %v2141
    %v2143 = vpop.f32.mrf.mxu0
    %v2144 = vadd.f32 %v636, %v2143
    %2145 = vmatprep.mubr.bf16.mxu0 %v360
    %2146 = vmatmul.mubr.bf16.gmra.mxu0 %v359
    %v2147 = vpop.f32.mrf.mxu0
    %v2148 = vadd.f32 %v632, %v2147
    %v2149 = vpop.f32.mrf.mxu0
    %v2150 = vadd.f32 %v636, %v2149
    %v2151 = vpop.f32.mrf.mxu0
    %v2152 = vpop.f32.mrf.mxu0
    %2153 = vdwg.mxu0
    %2154 = vmatprep.subr.bf16.mxu0 %v1616
    %2155 = vmatpush1.bf16.msra.mxu0 %v1615
    %2156 = vmatprep.subr.bf16.mxu0 %v1608
    %2157 = vmatpush1.bf16.msra.mxu0 %v1607
    %2158 = vmatprep.subr.bf16.mxu0 %v1600
    %2159 = vmatpush1.bf16.msra.mxu0 %v1599
    %2160 = vmatprep.subr.bf16.mxu0 %v1592
    %2161 = vmatpush1.bf16.msra.mxu0 %v1591
    %2162 = vmatprep.subr.bf16.mxu0 %v1584
    %2163 = vmatpush1.bf16.msra.mxu0 %v1583
    %2164 = vmatprep.subr.bf16.mxu0 %v1576
    %2165 = vmatpush1.bf16.msra.mxu0 %v1575
    %2166 = vmatprep.subr.bf16.mxu0 %v1568
    %2167 = vmatpush1.bf16.msra.mxu0 %v1567
    %2168 = vmatprep.subr.bf16.mxu0 %v1560
    %2169 = vmatpush1.bf16.msra.mxu0 %v1559
    %2170 = vmatprep.subr.bf16.mxu0 %v1680
    %2171 = vmatpush2.bf16.msra.mxu0 %v1679
    %2172 = vmatprep.subr.bf16.mxu0 %v1672
    %2173 = vmatpush2.bf16.msra.mxu0 %v1671
    %2174 = vmatprep.subr.bf16.mxu0 %v1664
    %2175 = vmatpush2.bf16.msra.mxu0 %v1663
    %2176 = vmatprep.subr.bf16.mxu0 %v1656
    %2177 = vmatpush2.bf16.msra.mxu0 %v1655
    %2178 = vmatprep.subr.bf16.mxu0 %v1648
    %2179 = vmatpush2.bf16.msra.mxu0 %v1647
    %2180 = vmatprep.subr.bf16.mxu0 %v1640
    %2181 = vmatpush2.bf16.msra.mxu0 %v1639
    %2182 = vmatprep.subr.bf16.mxu0 %v1632
    %2183 = vmatpush2.bf16.msra.mxu0 %v1631
    %2184 = vmatprep.subr.bf16.mxu0 %v1624
    %2185 = vmatpush2.bf16.msra.mxu0 %v1623
    %2186 = vmatprep.mubr.bf16.mxu0 %v350
    %2187 = vmatmul.mubr.bf16.gmra.mxu0 %v349
    %v2188 = vpop.f32.mrf.mxu0
    %v2189 = vadd.f32 %v2118, %v2188
    %v2190 = vpop.f32.mrf.mxu0
    %v2191 = vadd.f32 %v2120, %v2190
    %v2192 = vpop.f32.mrf.mxu0
    %v2193 = vadd.f32 %v2122, %v2192
    %v2194 = vpop.f32.mrf.mxu0
    %v2195 = vadd.f32 %v2124, %v2194
    %2196 = vmatprep.mubr.bf16.mxu0 %v354
    %2197 = vmatmul.mubr.bf16.gmra.mxu0 %v353
    %v2198 = vpop.f32.mrf.mxu0
    %v2199 = vadd.f32 %v2128, %v2198
    %v2200 = vpop.f32.mrf.mxu0
    %v2201 = vadd.f32 %v2130, %v2200
    %v2202 = vpop.f32.mrf.mxu0
    %v2203 = vadd.f32 %v2132, %v2202
    %v2204 = vpop.f32.mrf.mxu0
    %v2205 = vadd.f32 %v2134, %v2204
    %2206 = vmatprep.mubr.bf16.mxu0 %v358
    %2207 = vmatmul.mubr.bf16.gmra.mxu0 %v357
    %v2208 = vpop.f32.mrf.mxu0
    %v2209 = vadd.f32 %v2138, %v2208
    %v2210 = vpop.f32.mrf.mxu0
    %v2211 = vadd.f32 %v2140, %v2210
    %v2212 = vpop.f32.mrf.mxu0
    %v2213 = vadd.f32 %v2142, %v2212
    %v2214 = vpop.f32.mrf.mxu0
    %v2215 = vadd.f32 %v2144, %v2214
    %2216 = vmatprep.mubr.bf16.mxu0 %v362
    %2217 = vmatmul.mubr.bf16.gmra.mxu0 %v361
    %v2218 = vpop.f32.mrf.mxu0
    %v2219 = vadd.f32 %v2148, %v2218
    %v2220 = vpop.f32.mrf.mxu0
    %v2221 = vadd.f32 %v2150, %v2220
    %v2222 = vpop.f32.mrf.mxu0
    %v2223 = vpop.f32.mrf.mxu0
    %2224 = vdwg.mxu0
    %2225 = vmatprep.subr.bf16.mxu0 %v1490
    %2226 = vmatpush1.bf16.msra.mxu0 %v1489
    %2227 = vmatprep.subr.bf16.mxu0 %v1482
    %2228 = vmatpush1.bf16.msra.mxu0 %v1481
    %2229 = vmatprep.subr.bf16.mxu0 %v1474
    %2230 = vmatpush1.bf16.msra.mxu0 %v1473
    %2231 = vmatprep.subr.bf16.mxu0 %v1466
    %2232 = vmatpush1.bf16.msra.mxu0 %v1465
    %2233 = vmatprep.subr.bf16.mxu0 %v1458
    %2234 = vmatpush1.bf16.msra.mxu0 %v1457
    %2235 = vmatprep.subr.bf16.mxu0 %v1450
    %2236 = vmatpush1.bf16.msra.mxu0 %v1449
    %2237 = vmatprep.subr.bf16.mxu0 %v1442
    %2238 = vmatpush1.bf16.msra.mxu0 %v1441
    %2239 = vmatprep.subr.bf16.mxu0 %v1434
    %2240 = vmatpush1.bf16.msra.mxu0 %v1433
    %2241 = vmatprep.subr.bf16.mxu0 %v1554
    %2242 = vmatpush2.bf16.msra.mxu0 %v1553
    %2243 = vmatprep.subr.bf16.mxu0 %v1546
    %2244 = vmatpush2.bf16.msra.mxu0 %v1545
    %2245 = vmatprep.subr.bf16.mxu0 %v1538
    %2246 = vmatpush2.bf16.msra.mxu0 %v1537
    %2247 = vmatprep.subr.bf16.mxu0 %v1530
    %2248 = vmatpush2.bf16.msra.mxu0 %v1529
    %2249 = vmatprep.subr.bf16.mxu0 %v1522
    %2250 = vmatpush2.bf16.msra.mxu0 %v1521
    %2251 = vmatprep.subr.bf16.mxu0 %v1514
    %2252 = vmatpush2.bf16.msra.mxu0 %v1513
    %2253 = vmatprep.subr.bf16.mxu0 %v1506
    %2254 = vmatpush2.bf16.msra.mxu0 %v1505
    %2255 = vmatprep.subr.bf16.mxu0 %v1498
    %2256 = vmatpush2.bf16.msra.mxu0 %v1497
    %2257 = vmatprep.mubr.bf16.mxu0 %v348
    %2258 = vmatmul.mubr.bf16.gmra.mxu0 %v347
    %v2259 = vpop.f32.mrf.mxu0
    %v2260 = vadd.f32 %v640, %v2259
    %v2261 = vpop.f32.mrf.mxu0
    %v2262 = vadd.f32 %v644, %v2261
    %v2263 = vpop.f32.mrf.mxu0
    %v2264 = vadd.f32 %v640, %v2263
    %v2265 = vpop.f32.mrf.mxu0
    %v2266 = vadd.f32 %v644, %v2265
    %2267 = vmatprep.mubr.bf16.mxu0 %v352
    %2268 = vmatmul.mubr.bf16.gmra.mxu0 %v351
    %v2269 = vpop.f32.mrf.mxu0
    %v2270 = vadd.f32 %v640, %v2269
    %v2271 = vpop.f32.mrf.mxu0
    %v2272 = vadd.f32 %v644, %v2271
    %v2273 = vpop.f32.mrf.mxu0
    %v2274 = vadd.f32 %v640, %v2273
    %v2275 = vpop.f32.mrf.mxu0
    %v2276 = vadd.f32 %v644, %v2275
    %2277 = vmatprep.mubr.bf16.mxu0 %v356
    %2278 = vmatmul.mubr.bf16.gmra.mxu0 %v355
    %v2279 = vpop.f32.mrf.mxu0
    %v2280 = vadd.f32 %v640, %v2279
    %v2281 = vpop.f32.mrf.mxu0
    %v2282 = vadd.f32 %v644, %v2281
    %v2283 = vpop.f32.mrf.mxu0
    %v2284 = vadd.f32 %v640, %v2283
    %v2285 = vpop.f32.mrf.mxu0
    %v2286 = vadd.f32 %v644, %v2285
    %2287 = vmatprep.mubr.bf16.mxu0 %v360
    %2288 = vmatmul.mubr.bf16.gmra.mxu0 %v359
    %v2289 = vpop.f32.mrf.mxu0
    %v2290 = vadd.f32 %v640, %v2289
    %v2291 = vpop.f32.mrf.mxu0
    %v2292 = vadd.f32 %v644, %v2291
    %v2293 = vpop.f32.mrf.mxu0
    %v2294 = vpop.f32.mrf.mxu0
    %2295 = vdwg.mxu0
    %2296 = vmatprep.subr.bf16.mxu0 %v1618
    %2297 = vmatpush1.bf16.msra.mxu0 %v1617
    %2298 = vmatprep.subr.bf16.mxu0 %v1610
    %2299 = vmatpush1.bf16.msra.mxu0 %v1609
    %2300 = vmatprep.subr.bf16.mxu0 %v1602
    %2301 = vmatpush1.bf16.msra.mxu0 %v1601
    %2302 = vmatprep.subr.bf16.mxu0 %v1594
    %2303 = vmatpush1.bf16.msra.mxu0 %v1593
    %2304 = vmatprep.subr.bf16.mxu0 %v1586
    %2305 = vmatpush1.bf16.msra.mxu0 %v1585
    %2306 = vmatprep.subr.bf16.mxu0 %v1578
    %2307 = vmatpush1.bf16.msra.mxu0 %v1577
    %2308 = vmatprep.subr.bf16.mxu0 %v1570
    %2309 = vmatpush1.bf16.msra.mxu0 %v1569
    %2310 = vmatprep.subr.bf16.mxu0 %v1562
    %2311 = vmatpush1.bf16.msra.mxu0 %v1561
    %2312 = vmatprep.subr.bf16.mxu0 %v1682
    %2313 = vmatpush2.bf16.msra.mxu0 %v1681
    %2314 = vmatprep.subr.bf16.mxu0 %v1674
    %2315 = vmatpush2.bf16.msra.mxu0 %v1673
    %2316 = vmatprep.subr.bf16.mxu0 %v1666
    %2317 = vmatpush2.bf16.msra.mxu0 %v1665
    %2318 = vmatprep.subr.bf16.mxu0 %v1658
    %2319 = vmatpush2.bf16.msra.mxu0 %v1657
    %2320 = vmatprep.subr.bf16.mxu0 %v1650
    %2321 = vmatpush2.bf16.msra.mxu0 %v1649
    %2322 = vmatprep.subr.bf16.mxu0 %v1642
    %2323 = vmatpush2.bf16.msra.mxu0 %v1641
    %2324 = vmatprep.subr.bf16.mxu0 %v1634
    %2325 = vmatpush2.bf16.msra.mxu0 %v1633
    %2326 = vmatprep.subr.bf16.mxu0 %v1626
    %2327 = vmatpush2.bf16.msra.mxu0 %v1625
    %2328 = vmatprep.mubr.bf16.mxu0 %v350
    %2329 = vmatmul.mubr.bf16.gmra.mxu0 %v349
    %v2330 = vpop.f32.mrf.mxu0
    %v2331 = vadd.f32 %v2260, %v2330
    %v2332 = vpop.f32.mrf.mxu0
    %v2333 = vadd.f32 %v2262, %v2332
    %v2334 = vpop.f32.mrf.mxu0
    %v2335 = vadd.f32 %v2264, %v2334
    %v2336 = vpop.f32.mrf.mxu0
    %v2337 = vadd.f32 %v2266, %v2336
    %2338 = vmatprep.mubr.bf16.mxu0 %v354
    %2339 = vmatmul.mubr.bf16.gmra.mxu0 %v353
    %v2340 = vpop.f32.mrf.mxu0
    %v2341 = vadd.f32 %v2270, %v2340
    %v2342 = vpop.f32.mrf.mxu0
    %v2343 = vadd.f32 %v2272, %v2342
    %v2344 = vpop.f32.mrf.mxu0
    %v2345 = vadd.f32 %v2274, %v2344
    %v2346 = vpop.f32.mrf.mxu0
    %v2347 = vadd.f32 %v2276, %v2346
    %2348 = vmatprep.mubr.bf16.mxu0 %v358
    %2349 = vmatmul.mubr.bf16.gmra.mxu0 %v357
    %v2350 = vpop.f32.mrf.mxu0
    %v2351 = vadd.f32 %v2280, %v2350
    %v2352 = vpop.f32.mrf.mxu0
    %v2353 = vadd.f32 %v2282, %v2352
    %v2354 = vpop.f32.mrf.mxu0
    %v2355 = vadd.f32 %v2284, %v2354
    %v2356 = vpop.f32.mrf.mxu0
    %v2357 = vadd.f32 %v2286, %v2356
    %2358 = vmatprep.mubr.bf16.mxu0 %v362
    %2359 = vmatmul.mubr.bf16.gmra.mxu0 %v361
    %v2360 = vpop.f32.mrf.mxu0
    %v2361 = vadd.f32 %v2290, %v2360
    %v2362 = vpop.f32.mrf.mxu0
    %v2363 = vadd.f32 %v2292, %v2362
    %v2364 = vpop.f32.mrf.mxu0
    %v2365 = vpop.f32.mrf.mxu0
    %2366 = vdwg.mxu0
    %2367 = vmatprep.subr.bf16.mxu0 %v1492
    %2368 = vmatpush1.bf16.msra.mxu0 %v1491
    %2369 = vmatprep.subr.bf16.mxu0 %v1484
    %2370 = vmatpush1.bf16.msra.mxu0 %v1483
    %2371 = vmatprep.subr.bf16.mxu0 %v1476
    %2372 = vmatpush1.bf16.msra.mxu0 %v1475
    %2373 = vmatprep.subr.bf16.mxu0 %v1468
    %2374 = vmatpush1.bf16.msra.mxu0 %v1467
    %2375 = vmatprep.subr.bf16.mxu0 %v1460
    %2376 = vmatpush1.bf16.msra.mxu0 %v1459
    %2377 = vmatprep.subr.bf16.mxu0 %v1452
    %2378 = vmatpush1.bf16.msra.mxu0 %v1451
    %2379 = vmatprep.subr.bf16.mxu0 %v1444
    %2380 = vmatpush1.bf16.msra.mxu0 %v1443
    %2381 = vmatprep.subr.bf16.mxu0 %v1436
    %2382 = vmatpush1.bf16.msra.mxu0 %v1435
    %2383 = vmatprep.subr.bf16.mxu0 %v1556
    %2384 = vmatpush2.bf16.msra.mxu0 %v1555
    %2385 = vmatprep.subr.bf16.mxu0 %v1548
    %2386 = vmatpush2.bf16.msra.mxu0 %v1547
    %2387 = vmatprep.subr.bf16.mxu0 %v1540
    %2388 = vmatpush2.bf16.msra.mxu0 %v1539
    %2389 = vmatprep.subr.bf16.mxu0 %v1532
    %2390 = vmatpush2.bf16.msra.mxu0 %v1531
    %2391 = vmatprep.subr.bf16.mxu0 %v1524
    %2392 = vmatpush2.bf16.msra.mxu0 %v1523
    %2393 = vmatprep.subr.bf16.mxu0 %v1516
    %2394 = vmatpush2.bf16.msra.mxu0 %v1515
    %2395 = vmatprep.subr.bf16.mxu0 %v1508
    %2396 = vmatpush2.bf16.msra.mxu0 %v1507
    %2397 = vmatprep.subr.bf16.mxu0 %v1500
    %2398 = vmatpush2.bf16.msra.mxu0 %v1499
    %2399 = vmatprep.mubr.bf16.mxu0 %v348
    %2400 = vmatmul.mubr.bf16.gmra.mxu0 %v347
    %v2401 = vpop.f32.mrf.mxu0
    %v2402 = vadd.f32 %v648, %v2401
    %v2403 = vpop.f32.mrf.mxu0
    %v2404 = vadd.f32 %v652, %v2403
    %v2405 = vpop.f32.mrf.mxu0
    %v2406 = vadd.f32 %v648, %v2405
    %v2407 = vpop.f32.mrf.mxu0
    %v2408 = vadd.f32 %v652, %v2407
    %2409 = vmatprep.mubr.bf16.mxu0 %v352
    %2410 = vmatmul.mubr.bf16.gmra.mxu0 %v351
    %v2411 = vpop.f32.mrf.mxu0
    %v2412 = vadd.f32 %v648, %v2411
    %v2413 = vpop.f32.mrf.mxu0
    %v2414 = vadd.f32 %v652, %v2413
    %v2415 = vpop.f32.mrf.mxu0
    %v2416 = vadd.f32 %v648, %v2415
    %v2417 = vpop.f32.mrf.mxu0
    %v2418 = vadd.f32 %v652, %v2417
    %2419 = vmatprep.mubr.bf16.mxu0 %v356
    %2420 = vmatmul.mubr.bf16.gmra.mxu0 %v355
    %v2421 = vpop.f32.mrf.mxu0
    %v2422 = vadd.f32 %v648, %v2421
    %v2423 = vpop.f32.mrf.mxu0
    %v2424 = vadd.f32 %v652, %v2423
    %v2425 = vpop.f32.mrf.mxu0
    %v2426 = vadd.f32 %v648, %v2425
    %v2427 = vpop.f32.mrf.mxu0
    %v2428 = vadd.f32 %v652, %v2427
    %2429 = vmatprep.mubr.bf16.mxu0 %v360
    %2430 = vmatmul.mubr.bf16.gmra.mxu0 %v359
    %v2431 = vpop.f32.mrf.mxu0
    %v2432 = vadd.f32 %v648, %v2431
    %v2433 = vpop.f32.mrf.mxu0
    %v2434 = vadd.f32 %v652, %v2433
    %v2435 = vpop.f32.mrf.mxu0
    %v2436 = vpop.f32.mrf.mxu0
    %2437 = vdwg.mxu0
    %2438 = vmatprep.subr.bf16.mxu0 %v1620
    %2439 = vmatpush1.bf16.msra.mxu0 %v1619
    %2440 = vmatprep.subr.bf16.mxu0 %v1612
    %2441 = vmatpush1.bf16.msra.mxu0 %v1611
    %2442 = vmatprep.subr.bf16.mxu0 %v1604
    %2443 = vmatpush1.bf16.msra.mxu0 %v1603
    %2444 = vmatprep.subr.bf16.mxu0 %v1596
    %2445 = vmatpush1.bf16.msra.mxu0 %v1595
    %2446 = vmatprep.subr.bf16.mxu0 %v1588
    %2447 = vmatpush1.bf16.msra.mxu0 %v1587
    %2448 = vmatprep.subr.bf16.mxu0 %v1580
    %2449 = vmatpush1.bf16.msra.mxu0 %v1579
    %2450 = vmatprep.subr.bf16.mxu0 %v1572
    %2451 = vmatpush1.bf16.msra.mxu0 %v1571
    %2452 = vmatprep.subr.bf16.mxu0 %v1564
    %2453 = vmatpush1.bf16.msra.mxu0 %v1563
    %2454 = vmatprep.subr.bf16.mxu0 %v1684
    %2455 = vmatpush2.bf16.msra.mxu0 %v1683
    %2456 = vmatprep.subr.bf16.mxu0 %v1676
    %2457 = vmatpush2.bf16.msra.mxu0 %v1675
    %2458 = vmatprep.subr.bf16.mxu0 %v1668
    %2459 = vmatpush2.bf16.msra.mxu0 %v1667
    %2460 = vmatprep.subr.bf16.mxu0 %v1660
    %2461 = vmatpush2.bf16.msra.mxu0 %v1659
    %2462 = vmatprep.subr.bf16.mxu0 %v1652
    %2463 = vmatpush2.bf16.msra.mxu0 %v1651
    %2464 = vmatprep.subr.bf16.mxu0 %v1644
    %2465 = vmatpush2.bf16.msra.mxu0 %v1643
    %2466 = vmatprep.subr.bf16.mxu0 %v1636
    %2467 = vmatpush2.bf16.msra.mxu0 %v1635
    %2468 = vmatprep.subr.bf16.mxu0 %v1628
    %2469 = vmatpush2.bf16.msra.mxu0 %v1627
    %2470 = vmatprep.mubr.bf16.mxu0 %v350
    %2471 = vmatmul.mubr.bf16.gmra.mxu0 %v349
    %v2472 = vpop.f32.mrf.mxu0
    %v2473 = vadd.f32 %v2402, %v2472
    %v2474 = vpop.f32.mrf.mxu0
    %v2475 = vadd.f32 %v2404, %v2474
    %v2476 = vpop.f32.mrf.mxu0
    %v2477 = vadd.f32 %v2406, %v2476
    %v2478 = vpop.f32.mrf.mxu0
    %v2479 = vadd.f32 %v2408, %v2478
    %2480 = vmatprep.mubr.bf16.mxu0 %v354
    %2481 = vmatmul.mubr.bf16.gmra.mxu0 %v353
    %v2482 = vpop.f32.mrf.mxu0
    %v2483 = vadd.f32 %v2412, %v2482
    %v2484 = vpop.f32.mrf.mxu0
    %v2485 = vadd.f32 %v2414, %v2484
    %v2486 = vpop.f32.mrf.mxu0
    %v2487 = vadd.f32 %v2416, %v2486
    %v2488 = vpop.f32.mrf.mxu0
    %v2489 = vadd.f32 %v2418, %v2488
    %2490 = vmatprep.mubr.bf16.mxu0 %v358
    %2491 = vmatmul.mubr.bf16.gmra.mxu0 %v357
    %v2492 = vpop.f32.mrf.mxu0
    %v2493 = vadd.f32 %v2422, %v2492
    %v2494 = vpop.f32.mrf.mxu0
    %v2495 = vadd.f32 %v2424, %v2494
    %v2496 = vpop.f32.mrf.mxu0
    %v2497 = vadd.f32 %v2426, %v2496
    %v2498 = vpop.f32.mrf.mxu0
    %v2499 = vadd.f32 %v2428, %v2498
    %2500 = vmatprep.mubr.bf16.mxu0 %v362
    %2501 = vmatmul.mubr.bf16.gmra.mxu0 %v361
    %v2502 = vpop.f32.mrf.mxu0
    %v2503 = vadd.f32 %v2432, %v2502
    %v2504 = vpop.f32.mrf.mxu0
    %v2505 = vadd.f32 %v2434, %v2504
    %v2506 = vpop.f32.mrf.mxu0
    %v2507 = vpop.f32.mrf.mxu0
    %2508 = vdwg.mxu0
    %v2509 = vmax.f32 %v2047, 0.0
    %v2510 = vmax.f32 %v2049, 0.0
    %v2511 = vmax.f32 %v2189, 0.0
    %v2512 = vmax.f32 %v2191, 0.0
    %v2513 = vmax.f32 %v2331, 0.0
    %v2514 = vmax.f32 %v2333, 0.0
    %v2515 = vmax.f32 %v2473, 0.0
    %v2516 = vmax.f32 %v2475, 0.0
    %v2517 = vmax.f32 %v2051, 0.0
    %v2518 = vmax.f32 %v2053, 0.0
    %v2519 = vmax.f32 %v2193, 0.0
    %v2520 = vmax.f32 %v2195, 0.0
    %v2521 = vmax.f32 %v2335, 0.0
    %v2522 = vmax.f32 %v2337, 0.0
    %v2523 = vmax.f32 %v2477, 0.0
    %v2524 = vmax.f32 %v2479, 0.0
    %v2525 = vmax.f32 %v2057, 0.0
    %v2526 = vmax.f32 %v2059, 0.0
    %v2527 = vmax.f32 %v2199, 0.0
    %v2528 = vmax.f32 %v2201, 0.0
    %v2529 = vmax.f32 %v2341, 0.0
    %v2530 = vmax.f32 %v2343, 0.0
    %v2531 = vmax.f32 %v2483, 0.0
    %v2532 = vmax.f32 %v2485, 0.0
    %v2533 = vmax.f32 %v2061, 0.0
    %v2534 = vmax.f32 %v2063, 0.0
    %v2535 = vmax.f32 %v2203, 0.0
    %v2536 = vmax.f32 %v2205, 0.0
    %v2537 = vmax.f32 %v2345, 0.0
    %v2538 = vmax.f32 %v2347, 0.0
    %v2539 = vmax.f32 %v2487, 0.0
    %v2540 = vmax.f32 %v2489, 0.0
    %v2541 = vmax.f32 %v2067, 0.0
    %v2542 = vmax.f32 %v2069, 0.0
    %v2543 = vmax.f32 %v2209, 0.0
    %v2544 = vmax.f32 %v2211, 0.0
    %v2545 = vmax.f32 %v2351, 0.0
    %v2546 = vmax.f32 %v2353, 0.0
    %v2547 = vmax.f32 %v2493, 0.0
    %v2548 = vmax.f32 %v2495, 0.0
    %v2549 = vmax.f32 %v2071, 0.0
    %v2550 = vmax.f32 %v2073, 0.0
    %v2551 = vmax.f32 %v2213, 0.0
    %v2552 = vmax.f32 %v2215, 0.0
    %v2553 = vmax.f32 %v2355, 0.0
    %v2554 = vmax.f32 %v2357, 0.0
    %v2555 = vmax.f32 %v2497, 0.0
    %v2556 = vmax.f32 %v2499, 0.0
    %v2557 = vmax.f32 %v2077, 0.0
    %v2558 = vmax.f32 %v2079, 0.0
    %v2559 = vmax.f32 %v2219, 0.0
    %v2560 = vmax.f32 %v2221, 0.0
    %v2561 = vmax.f32 %v2361, 0.0
    %v2562 = vmax.f32 %v2363, 0.0
    %v2563 = vmax.f32 %v2503, 0.0
    %v2564 = vmax.f32 %v2505, 0.0
    %v2565 = vpack.c.bf16 %v2517, %v2509
    %v2566 = vpack.c.bf16 %v2518, %v2510
    %v2567 = vpack.c.bf16 %v2519, %v2511
    %v2568 = vpack.c.bf16 %v2520, %v2512
    %v2569 = vpack.c.bf16 %v2521, %v2513
    %v2570 = vpack.c.bf16 %v2522, %v2514
    %v2571 = vpack.c.bf16 %v2523, %v2515
    %v2572 = vpack.c.bf16 %v2524, %v2516
    %v2573 = vpack.c.bf16 %v2533, %v2525
    %v2574 = vpack.c.bf16 %v2534, %v2526
    %v2575 = vpack.c.bf16 %v2535, %v2527
    %v2576 = vpack.c.bf16 %v2536, %v2528
    %v2577 = vpack.c.bf16 %v2537, %v2529
    %v2578 = vpack.c.bf16 %v2538, %v2530
    %v2579 = vpack.c.bf16 %v2539, %v2531
    %v2580 = vpack.c.bf16 %v2540, %v2532
    %v2581 = vpack.c.bf16 %v2549, %v2541
    %v2582 = vpack.c.bf16 %v2550, %v2542
    %v2583 = vpack.c.bf16 %v2551, %v2543
    %v2584 = vpack.c.bf16 %v2552, %v2544
    %v2585 = vpack.c.bf16 %v2553, %v2545
    %v2586 = vpack.c.bf16 %v2554, %v2546
    %v2587 = vpack.c.bf16 %v2555, %v2547
    %v2588 = vpack.c.bf16 %v2556, %v2548
    %v2589 = vpack.c.bf16 %v2557, %v2557
    %v2590 = vpack.c.bf16 %v2558, %v2558
    %v2591 = vpack.c.bf16 %v2559, %v2559
    %v2592 = vpack.c.bf16 %v2560, %v2560
    %v2593 = vpack.c.bf16 %v2561, %v2561
    %v2594 = vpack.c.bf16 %v2562, %v2562
    %v2595 = vpack.c.bf16 %v2563, %v2563
    %v2596 = vpack.c.bf16 %v2564, %v2564
    %v2597 = vld [vmem:[#allocation7] sm:$0xf]
    %v2598 = vld [vmem:[#allocation7 + $0x4] sm:$0xf]
    %v2599 = vld [vmem:[#allocation7 + $0x8] sm:$0xf]
    %v2600 = vld [vmem:[#allocation7 + $0xc] sm:$0xf]
    %v2601 = vld [vmem:[#allocation7 + $0x10] sm:$0xf]
    %v2602 = vld [vmem:[#allocation7 + $0x14] sm:$0xf]
    %v2603 = vld [vmem:[#allocation7 + $0x18] sm:$0xf]
    %v2604 = vld [vmem:[#allocation7 + $0x1c] sm:$0xf]
    %v2605 = vld [vmem:[#allocation7 + $0x20] sm:$0xf]
    %v2606 = vld [vmem:[#allocation7 + $0x24] sm:$0xf]
    %v2607 = vld [vmem:[#allocation7 + $0x28] sm:$0xf]
    %v2608 = vld [vmem:[#allocation7 + $0x2c] sm:$0xf]
    %v2609 = vld [vmem:[#allocation7 + $0x30] sm:$0xf]
    %v2610 = vld [vmem:[#allocation7 + $0x34] sm:$0xf]
    %v2611 = vld [vmem:[#allocation7 + $0x38] sm:$0xf]
    %v2612 = vld [vmem:[#allocation7 + $0x3c] sm:$0xf]
    %v2613 = vld [vmem:[#allocation7 + $0x40] sm:$0xf]
    %v2614 = vld [vmem:[#allocation7 + $0x44] sm:$0xf]
    %v2615 = vld [vmem:[#allocation7 + $0x48] sm:$0xf]
    %v2616 = vld [vmem:[#allocation7 + $0x4c] sm:$0xf]
    %v2617 = vld [vmem:[#allocation7 + $0x50] sm:$0xf]
    %v2618 = vld [vmem:[#allocation7 + $0x54] sm:$0xf]
    %v2619 = vld [vmem:[#allocation7 + $0x58] sm:$0xf]
    %v2620 = vld [vmem:[#allocation7 + $0x5c] sm:$0xf]
    %v2621 = vld [vmem:[#allocation7 + $0x60] sm:$0xf]
    %v2622 = vld [vmem:[#allocation7 + $0x64] sm:$0xf]
    %v2623 = vld [vmem:[#allocation7 + $0x68] sm:$0xf]
    %v2624 = vld [vmem:[#allocation7 + $0x6c] sm:$0xf]
    %v2625 = vld [vmem:[#allocation7 + $0x70] sm:$0xf]
    %v2626 = vld [vmem:[#allocation7 + $0x74] sm:$0xf]
    %v2627 = vld [vmem:[#allocation7 + $0x78] sm:$0xf]
    %v2628 = vld [vmem:[#allocation7 + $0x7c] sm:$0xf]
    %v2629 = vld [vmem:[#allocation7 + $0x80] sm:$0xf]
    %v2630 = vld [vmem:[#allocation7 + $0x84] sm:$0xf]
    %v2631 = vld [vmem:[#allocation7 + $0x88] sm:$0xf]
    %v2632 = vld [vmem:[#allocation7 + $0x8c] sm:$0xf]
    %v2633 = vld [vmem:[#allocation7 + $0x90] sm:$0xf]
    %v2634 = vld [vmem:[#allocation7 + $0x94] sm:$0xf]
    %v2635 = vld [vmem:[#allocation7 + $0x98] sm:$0xf]
    %v2636 = vld [vmem:[#allocation7 + $0x9c] sm:$0xf]
    %v2637 = vld [vmem:[#allocation7 + $0xa0] sm:$0xf]
    %v2638 = vld [vmem:[#allocation7 + $0xa4] sm:$0xf]
    %v2639 = vld [vmem:[#allocation7 + $0xa8] sm:$0xf]
    %v2640 = vld [vmem:[#allocation7 + $0xac] sm:$0xf]
    %v2641 = vld [vmem:[#allocation7 + $0xb0] sm:$0xf]
    %v2642 = vld [vmem:[#allocation7 + $0xb4] sm:$0xf]
    %v2643 = vld [vmem:[#allocation7 + $0xb8] sm:$0xf]
    %v2644 = vld [vmem:[#allocation7 + $0xbc] sm:$0xf]
    %v2645 = vld [vmem:[#allocation7 + $0xc0] sm:$0xf]
    %v2646 = vld [vmem:[#allocation7 + $0xc4] sm:$0xf]
    %v2647 = vld [vmem:[#allocation7 + $0xc8] sm:$0xf]
    %v2648 = vld [vmem:[#allocation7 + $0xcc] sm:$0xf]
    %v2649 = vld [vmem:[#allocation7 + $0xd0] sm:$0xf]
    %v2650 = vld [vmem:[#allocation7 + $0xd4] sm:$0xf]
    %v2651 = vld [vmem:[#allocation7 + $0xd8] sm:$0xf]
    %v2652 = vld [vmem:[#allocation7 + $0xdc] sm:$0xf]
    %v2653 = vld [vmem:[#allocation7 + $0xe0] sm:$0xf]
    %v2654 = vld [vmem:[#allocation7 + $0xe4] sm:$0xf]
    %v2655 = vld [vmem:[#allocation7 + $0xe8] sm:$0xf]
    %v2656 = vld [vmem:[#allocation7 + $0xec] sm:$0xf]
    %v2657 = vld [vmem:[#allocation7 + $0xf0] sm:$0xf]
    %v2658 = vld [vmem:[#allocation7 + $0xf4] sm:$0xf]
    %v2659 = vld [vmem:[#allocation7 + $0xf8] sm:$0xf]
    %v2660 = vld [vmem:[#allocation7 + $0xfc] sm:$0xf]
    %v2661 = vld [vmem:[#allocation7 + $0x100] sm:$0xf]
    %v2662 = vld [vmem:[#allocation7 + $0x104] sm:$0xf]
    %v2663 = vld [vmem:[#allocation7 + $0x108] sm:$0xf]
    %v2664 = vld [vmem:[#allocation7 + $0x10c] sm:$0xf]
    %v2665 = vld [vmem:[#allocation7 + $0x110] sm:$0xf]
    %v2666 = vld [vmem:[#allocation7 + $0x114] sm:$0xf]
    %v2667 = vld [vmem:[#allocation7 + $0x118] sm:$0xf]
    %v2668 = vld [vmem:[#allocation7 + $0x11c] sm:$0xf]
    %v2669 = vld [vmem:[#allocation7 + $0x120] sm:$0xf]
    %v2670 = vld [vmem:[#allocation7 + $0x124] sm:$0xf]
    %v2671 = vld [vmem:[#allocation7 + $0x128] sm:$0xf]
    %v2672 = vld [vmem:[#allocation7 + $0x12c] sm:$0xf]
    %v2673 = vld [vmem:[#allocation7 + $0x130] sm:$0xf]
    %v2674 = vld [vmem:[#allocation7 + $0x134] sm:$0xf]
    %v2675 = vld [vmem:[#allocation7 + $0x138] sm:$0xf]
    %v2676 = vld [vmem:[#allocation7 + $0x13c] sm:$0xf]
    %v2677 = vld [vmem:[#allocation7 + $0x140] sm:$0xf]
    %v2678 = vld [vmem:[#allocation7 + $0x144] sm:$0xf]
    %v2679 = vld [vmem:[#allocation7 + $0x148] sm:$0xf]
    %v2680 = vld [vmem:[#allocation7 + $0x14c] sm:$0xf]
    %v2681 = vld [vmem:[#allocation7 + $0x150] sm:$0xf]
    %v2682 = vld [vmem:[#allocation7 + $0x154] sm:$0xf]
    %v2683 = vld [vmem:[#allocation7 + $0x158] sm:$0xf]
    %v2684 = vld [vmem:[#allocation7 + $0x15c] sm:$0xf]
    %v2685 = vld [vmem:[#allocation7 + $0x160] sm:$0xf]
    %v2686 = vld [vmem:[#allocation7 + $0x164] sm:$0xf]
    %v2687 = vld [vmem:[#allocation7 + $0x168] sm:$0xf]
    %v2688 = vld [vmem:[#allocation7 + $0x16c] sm:$0xf]
    %v2689 = vld [vmem:[#allocation7 + $0x170] sm:$0xf]
    %v2690 = vld [vmem:[#allocation7 + $0x174] sm:$0xf]
    %v2691 = vld [vmem:[#allocation7 + $0x178] sm:$0xf]
    %v2692 = vld [vmem:[#allocation7 + $0x17c] sm:$0xf]
    %v2693 = vld [vmem:[#allocation7 + $0x180] sm:$0xf]
    %v2694 = vld [vmem:[#allocation7 + $0x184] sm:$0xf]
    %v2695 = vld [vmem:[#allocation7 + $0x188] sm:$0xf]
    %v2696 = vld [vmem:[#allocation7 + $0x18c] sm:$0xf]
    %v2697 = vld [vmem:[#allocation7 + $0x190] sm:$0xf]
    %v2698 = vld [vmem:[#allocation7 + $0x194] sm:$0xf]
    %v2699 = vld [vmem:[#allocation7 + $0x198] sm:$0xf]
    %v2700 = vld [vmem:[#allocation7 + $0x19c] sm:$0xf]
    %v2701 = vld [vmem:[#allocation7 + $0x1a0] sm:$0xf]
    %v2702 = vld [vmem:[#allocation7 + $0x1a4] sm:$0xf]
    %v2703 = vld [vmem:[#allocation7 + $0x1a8] sm:$0xf]
    %v2704 = vld [vmem:[#allocation7 + $0x1ac] sm:$0xf]
    %v2705 = vld [vmem:[#allocation7 + $0x1b0] sm:$0xf]
    %v2706 = vld [vmem:[#allocation7 + $0x1b4] sm:$0xf]
    %v2707 = vld [vmem:[#allocation7 + $0x1b8] sm:$0xf]
    %v2708 = vld [vmem:[#allocation7 + $0x1bc] sm:$0xf]
    %v2709 = vld [vmem:[#allocation7 + $0x1c0] sm:$0xf]
    %v2710 = vld [vmem:[#allocation7 + $0x1c4] sm:$0xf]
    %v2711 = vld [vmem:[#allocation7 + $0x1c8] sm:$0xf]
    %v2712 = vld [vmem:[#allocation7 + $0x1cc] sm:$0xf]
    %v2713 = vld [vmem:[#allocation7 + $0x1d0] sm:$0xf]
    %v2714 = vld [vmem:[#allocation7 + $0x1d4] sm:$0xf]
    %v2715 = vld [vmem:[#allocation7 + $0x1d8] sm:$0xf]
    %v2716 = vld [vmem:[#allocation7 + $0x1dc] sm:$0xf]
    %v2717 = vld [vmem:[#allocation7 + $0x1e0] sm:$0xf]
    %v2718 = vld [vmem:[#allocation7 + $0x1e4] sm:$0xf]
    %v2719 = vld [vmem:[#allocation7 + $0x1e8] sm:$0xf]
    %v2720 = vld [vmem:[#allocation7 + $0x1ec] sm:$0xf]
    %v2721 = vld [vmem:[#allocation7 + $0x1f0] sm:$0xf]
    %v2722 = vld [vmem:[#allocation7 + $0x1f4] sm:$0xf]
    %v2723 = vld [vmem:[#allocation7 + $0x1f8] sm:$0xf]
    %v2724 = vld [vmem:[#allocation7 + $0x1fc] sm:$0xf]
    %v2725 = vld [vmem:[%s6] sm:$0x1]
    %v2727 = vlaneseq
    %v2728 = vshrl.u32 %v2727, 7
    %v2729 = vsub.s32 0, %v2728
    %v2730 = vrot.slane %v2725, %v2729
    %v2860 = vunpack.c.l.b16 %v2597
    %v2861 = vunpack.c.l.b16 %v2598
    %v2862 = vunpack.c.l.b16 %v2599
    %v2863 = vunpack.c.l.b16 %v2600
    %v2864 = vunpack.c.l.b16 %v2601
    %v2865 = vunpack.c.l.b16 %v2602
    %v2866 = vunpack.c.l.b16 %v2603
    %v2867 = vunpack.c.l.b16 %v2604
    %v2868 = vunpack.c.l.b16 %v2605
    %v2869 = vunpack.c.l.b16 %v2606
    %v2870 = vunpack.c.l.b16 %v2607
    %v2871 = vunpack.c.l.b16 %v2608
    %v2872 = vunpack.c.l.b16 %v2609
    %v2873 = vunpack.c.l.b16 %v2610
    %v2874 = vunpack.c.l.b16 %v2611
    %v2875 = vunpack.c.l.b16 %v2612
    %v2876 = vunpack.c.l.b16 %v2613
    %v2877 = vunpack.c.l.b16 %v2614
    %v2878 = vunpack.c.l.b16 %v2615
    %v2879 = vunpack.c.l.b16 %v2616
    %v2880 = vunpack.c.l.b16 %v2617
    %v2881 = vunpack.c.l.b16 %v2618
    %v2882 = vunpack.c.l.b16 %v2619
    %v2883 = vunpack.c.l.b16 %v2620
    %v2884 = vunpack.c.l.b16 %v2621
    %v2885 = vunpack.c.l.b16 %v2622
    %v2886 = vunpack.c.l.b16 %v2623
    %v2887 = vunpack.c.l.b16 %v2624
    %v2888 = vunpack.c.l.b16 %v2625
    %v2889 = vunpack.c.l.b16 %v2626
    %v2890 = vunpack.c.l.b16 %v2627
    %v2891 = vunpack.c.l.b16 %v2628
    %v2892 = vunpack.c.l.b16 %v2629
    %v2893 = vunpack.c.l.b16 %v2630
    %v2894 = vunpack.c.l.b16 %v2631
    %v2895 = vunpack.c.l.b16 %v2632
    %v2896 = vunpack.c.l.b16 %v2633
    %v2897 = vunpack.c.l.b16 %v2634
    %v2898 = vunpack.c.l.b16 %v2635
    %v2899 = vunpack.c.l.b16 %v2636
    %v2900 = vunpack.c.l.b16 %v2637
    %v2901 = vunpack.c.l.b16 %v2638
    %v2902 = vunpack.c.l.b16 %v2639
    %v2903 = vunpack.c.l.b16 %v2640
    %v2904 = vunpack.c.l.b16 %v2641
    %v2905 = vunpack.c.l.b16 %v2642
    %v2906 = vunpack.c.l.b16 %v2643
    %v2907 = vunpack.c.l.b16 %v2644
    %v2908 = vunpack.c.l.b16 %v2645
    %v2909 = vunpack.c.l.b16 %v2646
    %v2910 = vunpack.c.l.b16 %v2647
    %v2911 = vunpack.c.l.b16 %v2648
    %v2912 = vunpack.c.l.b16 %v2649
    %v2913 = vunpack.c.l.b16 %v2650
    %v2914 = vunpack.c.l.b16 %v2651
    %v2915 = vunpack.c.l.b16 %v2652
    %v2916 = vunpack.c.l.b16 %v2653
    %v2917 = vunpack.c.l.b16 %v2654
    %v2918 = vunpack.c.l.b16 %v2655
    %v2919 = vunpack.c.l.b16 %v2656
    %v2920 = vunpack.c.l.b16 %v2657
    %v2921 = vunpack.c.l.b16 %v2658
    %v2922 = vunpack.c.l.b16 %v2659
    %v2923 = vunpack.c.l.b16 %v2660
    %v2924 = vunpack.c.l.b16 %v2661
    %v2925 = vunpack.c.l.b16 %v2662
    %v2926 = vunpack.c.l.b16 %v2663
    %v2927 = vunpack.c.l.b16 %v2664
    %v2928 = vunpack.c.l.b16 %v2665
    %v2929 = vunpack.c.l.b16 %v2666
    %v2930 = vunpack.c.l.b16 %v2667
    %v2931 = vunpack.c.l.b16 %v2668
    %v2932 = vunpack.c.l.b16 %v2669
    %v2933 = vunpack.c.l.b16 %v2670
    %v2934 = vunpack.c.l.b16 %v2671
    %v2935 = vunpack.c.l.b16 %v2672
    %v2936 = vunpack.c.l.b16 %v2673
    %v2937 = vunpack.c.l.b16 %v2674
    %v2938 = vunpack.c.l.b16 %v2675
    %v2939 = vunpack.c.l.b16 %v2676
    %v2940 = vunpack.c.l.b16 %v2677
    %v2941 = vunpack.c.l.b16 %v2678
    %v2942 = vunpack.c.l.b16 %v2679
    %v2943 = vunpack.c.l.b16 %v2680
    %v2944 = vunpack.c.l.b16 %v2681
    %v2945 = vunpack.c.l.b16 %v2682
    %v2946 = vunpack.c.l.b16 %v2683
    %v2947 = vunpack.c.l.b16 %v2684
    %v2948 = vunpack.c.l.b16 %v2685
    %v2949 = vunpack.c.l.b16 %v2686
    %v2950 = vunpack.c.l.b16 %v2687
    %v2951 = vunpack.c.l.b16 %v2688
    %v2952 = vunpack.c.l.b16 %v2689
    %v2953 = vunpack.c.l.b16 %v2690
    %v2954 = vunpack.c.l.b16 %v2691
    %v2955 = vunpack.c.l.b16 %v2692
    %v2956 = vunpack.c.l.b16 %v2693
    %v2957 = vunpack.c.l.b16 %v2694
    %v2958 = vunpack.c.l.b16 %v2695
    %v2959 = vunpack.c.l.b16 %v2696
    %v2960 = vunpack.c.l.b16 %v2697
    %v2961 = vunpack.c.l.b16 %v2698
    %v2962 = vunpack.c.l.b16 %v2699
    %v2963 = vunpack.c.l.b16 %v2700
    %v2964 = vunpack.c.l.b16 %v2701
    %v2965 = vunpack.c.l.b16 %v2702
    %v2966 = vunpack.c.l.b16 %v2703
    %v2967 = vunpack.c.l.b16 %v2704
    %v2968 = vunpack.c.l.b16 %v2705
    %v2969 = vunpack.c.l.b16 %v2706
    %v2970 = vunpack.c.l.b16 %v2707
    %v2971 = vunpack.c.l.b16 %v2708
    %v2972 = vunpack.c.l.b16 %v2709
    %v2973 = vunpack.c.l.b16 %v2710
    %v2974 = vunpack.c.l.b16 %v2711
    %v2975 = vunpack.c.l.b16 %v2712
    %v2976 = vunpack.c.l.b16 %v2713
    %v2977 = vunpack.c.l.b16 %v2714
    %v2978 = vunpack.c.l.b16 %v2715
    %v2979 = vunpack.c.l.b16 %v2716
    %v2980 = vunpack.c.l.b16 %v2717
    %v2981 = vunpack.c.l.b16 %v2718
    %v2982 = vunpack.c.l.b16 %v2719
    %v2983 = vunpack.c.l.b16 %v2720
    %v2984 = vunpack.c.l.b16 %v2721
    %v2985 = vunpack.c.l.b16 %v2722
    %v2986 = vunpack.c.l.b16 %v2723
    %v2987 = vunpack.c.l.b16 %v2724
    %v2988 = vpack.c.b16 %v2861, %v2860
    %v2989 = vpack.c.b16 %v2863, %v2862
    %v2990 = vpack.c.b16 %v2865, %v2864
    %v2991 = vpack.c.b16 %v2867, %v2866
    %v2992 = vpack.c.b16 %v2869, %v2868
    %v2993 = vpack.c.b16 %v2871, %v2870
    %v2994 = vpack.c.b16 %v2873, %v2872
    %v2995 = vpack.c.b16 %v2875, %v2874
    %v2996 = vpack.c.b16 %v2877, %v2876
    %v2997 = vpack.c.b16 %v2879, %v2878
    %v2998 = vpack.c.b16 %v2881, %v2880
    %v2999 = vpack.c.b16 %v2883, %v2882
    %v3000 = vpack.c.b16 %v2885, %v2884
    %v3001 = vpack.c.b16 %v2887, %v2886
    %v3002 = vpack.c.b16 %v2889, %v2888
    %v3003 = vpack.c.b16 %v2891, %v2890
    %v3004 = vpack.c.b16 %v2893, %v2892
    %v3005 = vpack.c.b16 %v2895, %v2894
    %v3006 = vpack.c.b16 %v2897, %v2896
    %v3007 = vpack.c.b16 %v2899, %v2898
    %v3008 = vpack.c.b16 %v2901, %v2900
    %v3009 = vpack.c.b16 %v2903, %v2902
    %v3010 = vpack.c.b16 %v2905, %v2904
    %v3011 = vpack.c.b16 %v2907, %v2906
    %v3012 = vpack.c.b16 %v2909, %v2908
    %v3013 = vpack.c.b16 %v2911, %v2910
    %v3014 = vpack.c.b16 %v2913, %v2912
    %v3015 = vpack.c.b16 %v2915, %v2914
    %v3016 = vpack.c.b16 %v2917, %v2916
    %v3017 = vpack.c.b16 %v2919, %v2918
    %v3018 = vpack.c.b16 %v2921, %v2920
    %v3019 = vpack.c.b16 %v2923, %v2922
    %v3020 = vpack.c.b16 %v2925, %v2924
    %v3021 = vpack.c.b16 %v2927, %v2926
    %v3022 = vpack.c.b16 %v2929, %v2928
    %v3023 = vpack.c.b16 %v2931, %v2930
    %v3024 = vpack.c.b16 %v2933, %v2932
    %v3025 = vpack.c.b16 %v2935, %v2934
    %v3026 = vpack.c.b16 %v2937, %v2936
    %v3027 = vpack.c.b16 %v2939, %v2938
    %v3028 = vpack.c.b16 %v2941, %v2940
    %v3029 = vpack.c.b16 %v2943, %v2942
    %v3030 = vpack.c.b16 %v2945, %v2944
    %v3031 = vpack.c.b16 %v2947, %v2946
    %v3032 = vpack.c.b16 %v2949, %v2948
    %v3033 = vpack.c.b16 %v2951, %v2950
    %v3034 = vpack.c.b16 %v2953, %v2952
    %v3035 = vpack.c.b16 %v2955, %v2954
    %v3036 = vpack.c.b16 %v2957, %v2956
    %v3037 = vpack.c.b16 %v2959, %v2958
    %v3038 = vpack.c.b16 %v2961, %v2960
    %v3039 = vpack.c.b16 %v2963, %v2962
    %v3040 = vpack.c.b16 %v2965, %v2964
    %v3041 = vpack.c.b16 %v2967, %v2966
    %v3042 = vpack.c.b16 %v2969, %v2968
    %v3043 = vpack.c.b16 %v2971, %v2970
    %v3044 = vpack.c.b16 %v2973, %v2972
    %v3045 = vpack.c.b16 %v2975, %v2974
    %v3046 = vpack.c.b16 %v2977, %v2976
    %v3047 = vpack.c.b16 %v2979, %v2978
    %v3048 = vpack.c.b16 %v2981, %v2980
    %v3049 = vpack.c.b16 %v2983, %v2982
    %v3050 = vpack.c.b16 %v2985, %v2984
    %v3051 = vpack.c.b16 %v2987, %v2986
    %3116 = vmatprep.subr.bf16.mxu0 0
    %3117 = vmatpush1.bf16.msra.mxu0 %v2995
    %3118 = vmatprep.subr.bf16.mxu0 0
    %3119 = vmatpush1.bf16.msra.mxu0 %v2994
    %3120 = vmatprep.subr.bf16.mxu0 0
    %3121 = vmatpush1.bf16.msra.mxu0 %v2993
    %3122 = vmatprep.subr.bf16.mxu0 0
    %3123 = vmatpush1.bf16.msra.mxu0 %v2992
    %3124 = vmatprep.subr.bf16.mxu0 0
    %3125 = vmatpush1.bf16.msra.mxu0 %v2991
    %3126 = vmatprep.subr.bf16.mxu0 0
    %3127 = vmatpush1.bf16.msra.mxu0 %v2990
    %3128 = vmatprep.subr.bf16.mxu0 0
    %3129 = vmatpush1.bf16.msra.mxu0 %v2989
    %3130 = vmatprep.subr.bf16.mxu0 0
    %3131 = vmatpush1.bf16.msra.mxu0 %v2988
    %3132 = vmatprep.subr.bf16.mxu0 0
    %3133 = vmatpush2.bf16.msra.mxu0 %v3003
    %3134 = vmatprep.subr.bf16.mxu0 0
    %3135 = vmatpush2.bf16.msra.mxu0 %v3002
    %3136 = vmatprep.subr.bf16.mxu0 0
    %3137 = vmatpush2.bf16.msra.mxu0 %v3001
    %3138 = vmatprep.subr.bf16.mxu0 0
    %3139 = vmatpush2.bf16.msra.mxu0 %v3000
    %3140 = vmatprep.subr.bf16.mxu0 0
    %3141 = vmatpush2.bf16.msra.mxu0 %v2999
    %3142 = vmatprep.subr.bf16.mxu0 0
    %3143 = vmatpush2.bf16.msra.mxu0 %v2998
    %3144 = vmatprep.subr.bf16.mxu0 0
    %3145 = vmatpush2.bf16.msra.mxu0 %v2997
    %3146 = vmatprep.subr.bf16.mxu0 0
    %3147 = vmatpush2.bf16.msra.mxu0 %v2996
    %3148 = vmatprep.mubr.bf16.mxu0 %v2566
    %3149 = vmatmul.mubr.bf16.gmra.mxu0 %v2565
    %v3150 = vpop.f32.mrf.mxu0
    %v3151 = vadd.f32 %v2730, %v3150
    %v3152 = vpop.f32.mrf.mxu0
    %v3153 = vpop.f32.mrf.mxu0
    %v3154 = vadd.f32 %v2730, %v3153
    %v3155 = vpop.f32.mrf.mxu0
    %3156 = vmatprep.mubr.bf16.mxu0 %v2574
    %3157 = vmatmul.mubr.bf16.gmra.mxu0 %v2573
    %v3158 = vpop.f32.mrf.mxu0
    %v3159 = vadd.f32 %v2730, %v3158
    %v3160 = vpop.f32.mrf.mxu0
    %v3161 = vpop.f32.mrf.mxu0
    %v3162 = vadd.f32 %v2730, %v3161
    %v3163 = vpop.f32.mrf.mxu0
    %3164 = vmatprep.mubr.bf16.mxu0 %v2582
    %3165 = vmatmul.mubr.bf16.gmra.mxu0 %v2581
    %v3166 = vpop.f32.mrf.mxu0
    %v3167 = vadd.f32 %v2730, %v3166
    %v3168 = vpop.f32.mrf.mxu0
    %v3169 = vpop.f32.mrf.mxu0
    %v3170 = vadd.f32 %v2730, %v3169
    %v3171 = vpop.f32.mrf.mxu0
    %3172 = vmatprep.mubr.bf16.mxu0 %v2590
    %3173 = vmatmul.mubr.bf16.gmra.mxu0 %v2589
    %v3174 = vpop.f32.mrf.mxu0
    %v3175 = vadd.f32 %v2730, %v3174
    %v3176 = vpop.f32.mrf.mxu0
    %v3177 = vpop.f32.mrf.mxu0
    %v3178 = vpop.f32.mrf.mxu0
    %3179 = vdwg.mxu0
    %3180 = vmatprep.subr.bf16.mxu0 0
    %3181 = vmatpush1.bf16.msra.mxu0 %v3011
    %3182 = vmatprep.subr.bf16.mxu0 0
    %3183 = vmatpush1.bf16.msra.mxu0 %v3010
    %3184 = vmatprep.subr.bf16.mxu0 0
    %3185 = vmatpush1.bf16.msra.mxu0 %v3009
    %3186 = vmatprep.subr.bf16.mxu0 0
    %3187 = vmatpush1.bf16.msra.mxu0 %v3008
    %3188 = vmatprep.subr.bf16.mxu0 0
    %3189 = vmatpush1.bf16.msra.mxu0 %v3007
    %3190 = vmatprep.subr.bf16.mxu0 0
    %3191 = vmatpush1.bf16.msra.mxu0 %v3006
    %3192 = vmatprep.subr.bf16.mxu0 0
    %3193 = vmatpush1.bf16.msra.mxu0 %v3005
    %3194 = vmatprep.subr.bf16.mxu0 0
    %3195 = vmatpush1.bf16.msra.mxu0 %v3004
    %3196 = vmatprep.subr.bf16.mxu0 0
    %3197 = vmatpush2.bf16.msra.mxu0 %v3019
    %3198 = vmatprep.subr.bf16.mxu0 0
    %3199 = vmatpush2.bf16.msra.mxu0 %v3018
    %3200 = vmatprep.subr.bf16.mxu0 0
    %3201 = vmatpush2.bf16.msra.mxu0 %v3017
    %3202 = vmatprep.subr.bf16.mxu0 0
    %3203 = vmatpush2.bf16.msra.mxu0 %v3016
    %3204 = vmatprep.subr.bf16.mxu0 0
    %3205 = vmatpush2.bf16.msra.mxu0 %v3015
    %3206 = vmatprep.subr.bf16.mxu0 0
    %3207 = vmatpush2.bf16.msra.mxu0 %v3014
    %3208 = vmatprep.subr.bf16.mxu0 0
    %3209 = vmatpush2.bf16.msra.mxu0 %v3013
    %3210 = vmatprep.subr.bf16.mxu0 0
    %3211 = vmatpush2.bf16.msra.mxu0 %v3012
    %3212 = vmatprep.mubr.bf16.mxu0 %v2568
    %3213 = vmatmul.mubr.bf16.gmra.mxu0 %v2567
    %v3214 = vpop.f32.mrf.mxu0
    %v3215 = vadd.f32 %v3151, %v3214
    %v3216 = vpop.f32.mrf.mxu0
    %v3217 = vpop.f32.mrf.mxu0
    %v3218 = vadd.f32 %v3154, %v3217
    %v3219 = vpop.f32.mrf.mxu0
    %3220 = vmatprep.mubr.bf16.mxu0 %v2576
    %3221 = vmatmul.mubr.bf16.gmra.mxu0 %v2575
    %v3222 = vpop.f32.mrf.mxu0
    %v3223 = vadd.f32 %v3159, %v3222
    %v3224 = vpop.f32.mrf.mxu0
    %v3225 = vpop.f32.mrf.mxu0
    %v3226 = vadd.f32 %v3162, %v3225
    %v3227 = vpop.f32.mrf.mxu0
    %3228 = vmatprep.mubr.bf16.mxu0 %v2584
    %3229 = vmatmul.mubr.bf16.gmra.mxu0 %v2583
    %v3230 = vpop.f32.mrf.mxu0
    %v3231 = vadd.f32 %v3167, %v3230
    %v3232 = vpop.f32.mrf.mxu0
    %v3233 = vpop.f32.mrf.mxu0
    %v3234 = vadd.f32 %v3170, %v3233
    %v3235 = vpop.f32.mrf.mxu0
    %3236 = vmatprep.mubr.bf16.mxu0 %v2592
    %3237 = vmatmul.mubr.bf16.gmra.mxu0 %v2591
    %v3238 = vpop.f32.mrf.mxu0
    %v3239 = vadd.f32 %v3175, %v3238
    %v3240 = vpop.f32.mrf.mxu0
    %v3241 = vpop.f32.mrf.mxu0
    %v3242 = vpop.f32.mrf.mxu0
    %3243 = vdwg.mxu0
    %3244 = vmatprep.subr.bf16.mxu0 0
    %3245 = vmatpush1.bf16.msra.mxu0 %v3027
    %3246 = vmatprep.subr.bf16.mxu0 0
    %3247 = vmatpush1.bf16.msra.mxu0 %v3026
    %3248 = vmatprep.subr.bf16.mxu0 0
    %3249 = vmatpush1.bf16.msra.mxu0 %v3025
    %3250 = vmatprep.subr.bf16.mxu0 0
    %3251 = vmatpush1.bf16.msra.mxu0 %v3024
    %3252 = vmatprep.subr.bf16.mxu0 0
    %3253 = vmatpush1.bf16.msra.mxu0 %v3023
    %3254 = vmatprep.subr.bf16.mxu0 0
    %3255 = vmatpush1.bf16.msra.mxu0 %v3022
    %3256 = vmatprep.subr.bf16.mxu0 0
    %3257 = vmatpush1.bf16.msra.mxu0 %v3021
    %3258 = vmatprep.subr.bf16.mxu0 0
    %3259 = vmatpush1.bf16.msra.mxu0 %v3020
    %3260 = vmatprep.subr.bf16.mxu0 0
    %3261 = vmatpush2.bf16.msra.mxu0 %v3035
    %3262 = vmatprep.subr.bf16.mxu0 0
    %3263 = vmatpush2.bf16.msra.mxu0 %v3034
    %3264 = vmatprep.subr.bf16.mxu0 0
    %3265 = vmatpush2.bf16.msra.mxu0 %v3033
    %3266 = vmatprep.subr.bf16.mxu0 0
    %3267 = vmatpush2.bf16.msra.mxu0 %v3032
    %3268 = vmatprep.subr.bf16.mxu0 0
    %3269 = vmatpush2.bf16.msra.mxu0 %v3031
    %3270 = vmatprep.subr.bf16.mxu0 0
    %3271 = vmatpush2.bf16.msra.mxu0 %v3030
    %3272 = vmatprep.subr.bf16.mxu0 0
    %3273 = vmatpush2.bf16.msra.mxu0 %v3029
    %3274 = vmatprep.subr.bf16.mxu0 0
    %3275 = vmatpush2.bf16.msra.mxu0 %v3028
    %3276 = vmatprep.mubr.bf16.mxu0 %v2570
    %3277 = vmatmul.mubr.bf16.gmra.mxu0 %v2569
    %v3278 = vpop.f32.mrf.mxu0
    %v3279 = vadd.f32 %v3215, %v3278
    %v3280 = vpop.f32.mrf.mxu0
    %v3281 = vpop.f32.mrf.mxu0
    %v3282 = vadd.f32 %v3218, %v3281
    %v3283 = vpop.f32.mrf.mxu0
    %3284 = vmatprep.mubr.bf16.mxu0 %v2578
    %3285 = vmatmul.mubr.bf16.gmra.mxu0 %v2577
    %v3286 = vpop.f32.mrf.mxu0
    %v3287 = vadd.f32 %v3223, %v3286
    %v3288 = vpop.f32.mrf.mxu0
    %v3289 = vpop.f32.mrf.mxu0
    %v3290 = vadd.f32 %v3226, %v3289
    %v3291 = vpop.f32.mrf.mxu0
    %3292 = vmatprep.mubr.bf16.mxu0 %v2586
    %3293 = vmatmul.mubr.bf16.gmra.mxu0 %v2585
    %v3294 = vpop.f32.mrf.mxu0
    %v3295 = vadd.f32 %v3231, %v3294
    %v3296 = vpop.f32.mrf.mxu0
    %v3297 = vpop.f32.mrf.mxu0
    %v3298 = vadd.f32 %v3234, %v3297
    %v3299 = vpop.f32.mrf.mxu0
    %3300 = vmatprep.mubr.bf16.mxu0 %v2594
    %3301 = vmatmul.mubr.bf16.gmra.mxu0 %v2593
    %v3302 = vpop.f32.mrf.mxu0
    %v3303 = vadd.f32 %v3239, %v3302
    %v3304 = vpop.f32.mrf.mxu0
    %v3305 = vpop.f32.mrf.mxu0
    %v3306 = vpop.f32.mrf.mxu0
    %3307 = vdwg.mxu0
    %3308 = vmatprep.subr.bf16.mxu0 0
    %3309 = vmatpush1.bf16.msra.mxu0 %v3043
    %3310 = vmatprep.subr.bf16.mxu0 0
    %3311 = vmatpush1.bf16.msra.mxu0 %v3042
    %3312 = vmatprep.subr.bf16.mxu0 0
    %3313 = vmatpush1.bf16.msra.mxu0 %v3041
    %3314 = vmatprep.subr.bf16.mxu0 0
    %3315 = vmatpush1.bf16.msra.mxu0 %v3040
    %3316 = vmatprep.subr.bf16.mxu0 0
    %3317 = vmatpush1.bf16.msra.mxu0 %v3039
    %3318 = vmatprep.subr.bf16.mxu0 0
    %3319 = vmatpush1.bf16.msra.mxu0 %v3038
    %3320 = vmatprep.subr.bf16.mxu0 0
    %3321 = vmatpush1.bf16.msra.mxu0 %v3037
    %3322 = vmatprep.subr.bf16.mxu0 0
    %3323 = vmatpush1.bf16.msra.mxu0 %v3036
    %3324 = vmatprep.subr.bf16.mxu0 0
    %3325 = vmatpush2.bf16.msra.mxu0 %v3051
    %3326 = vmatprep.subr.bf16.mxu0 0
    %3327 = vmatpush2.bf16.msra.mxu0 %v3050
    %3328 = vmatprep.subr.bf16.mxu0 0
    %3329 = vmatpush2.bf16.msra.mxu0 %v3049
    %3330 = vmatprep.subr.bf16.mxu0 0
    %3331 = vmatpush2.bf16.msra.mxu0 %v3048
    %3332 = vmatprep.subr.bf16.mxu0 0
    %3333 = vmatpush2.bf16.msra.mxu0 %v3047
    %3334 = vmatprep.subr.bf16.mxu0 0
    %3335 = vmatpush2.bf16.msra.mxu0 %v3046
    %3336 = vmatprep.subr.bf16.mxu0 0
    %3337 = vmatpush2.bf16.msra.mxu0 %v3045
    %3338 = vmatprep.subr.bf16.mxu0 0
    %3339 = vmatpush2.bf16.msra.mxu0 %v3044
    %3340 = vmatprep.mubr.bf16.mxu0 %v2572
    %3341 = vmatmul.mubr.bf16.gmra.mxu0 %v2571
    %v3342 = vpop.f32.mrf.mxu0
    %v3343 = vadd.f32 %v3279, %v3342
    %v3344 = vpop.f32.mrf.mxu0
    %v3345 = vpop.f32.mrf.mxu0
    %v3346 = vadd.f32 %v3282, %v3345
    %v3347 = vpop.f32.mrf.mxu0
    %3348 = vmatprep.mubr.bf16.mxu0 %v2580
    %3349 = vmatmul.mubr.bf16.gmra.mxu0 %v2579
    %v3350 = vpop.f32.mrf.mxu0
    %v3351 = vadd.f32 %v3287, %v3350
    %v3352 = vpop.f32.mrf.mxu0
    %v3353 = vpop.f32.mrf.mxu0
    %v3354 = vadd.f32 %v3290, %v3353
    %v3355 = vpop.f32.mrf.mxu0
    %3356 = vmatprep.mubr.bf16.mxu0 %v2588
    %3357 = vmatmul.mubr.bf16.gmra.mxu0 %v2587
    %v3358 = vpop.f32.mrf.mxu0
    %v3359 = vadd.f32 %v3295, %v3358
    %v3360 = vpop.f32.mrf.mxu0
    %v3361 = vpop.f32.mrf.mxu0
    %v3362 = vadd.f32 %v3298, %v3361
    %v3363 = vpop.f32.mrf.mxu0
    %3364 = vmatprep.mubr.bf16.mxu0 %v2596
    %3365 = vmatmul.mubr.bf16.gmra.mxu0 %v2595
    %v3366 = vpop.f32.mrf.mxu0
    %v3367 = vadd.f32 %v3303, %v3366
    %v3368 = vpop.f32.mrf.mxu0
    %v3369 = vpop.f32.mrf.mxu0
    %v3370 = vpop.f32.mrf.mxu0
    %3371 = vdwg.mxu0
    %v3372 = vmax.f32 %v3343, 0.0
    %v3373 = vmax.f32 %v3346, 0.0
    %v3374 = vmax.f32 %v3351, 0.0
    %v3375 = vmax.f32 %v3354, 0.0
    %v3376 = vmax.f32 %v3359, 0.0
    %v3377 = vmax.f32 %v3362, 0.0
    %v3378 = vmax.f32 %v3367, 0.0
    %3379 = vst [vmem:[#allocation8] sm:$0xff] %v3372
    %3380 = vst [vmem:[#allocation8 + $0x8] sm:$0xff] %v3373
    %3381 = vst [vmem:[#allocation8 + $0x10] sm:$0xff] %v3374
    %3382 = vst [vmem:[#allocation8 + $0x18] sm:$0xff] %v3375
    %3383 = vst [vmem:[#allocation8 + $0x20] sm:$0xff] %v3376
    %3384 = vst [vmem:[#allocation8 + $0x28] sm:$0xff] %v3377
    %3385 = vst [vmem:[#allocation8 + $0x30] sm:$0xff] %v3378
    // Predicated region
    $region42: #{tpu_custom_call.1} parent=1 // pred_check
      _
    $region43: #{tpu_custom_call.1} parent=1 // pred_check_branch
      %3387 = sbr.rel (0) target = $region45
    $region44: #{tpu_custom_call.1} parent=1 // pred_region
      %s3389 = ssub.s32 896, 896
      %3390 = vsyncadd [#allocation4], %s3389
      %s3391 = sshll.u32 [#allocation8], 4
      %s3392 = int_to_ptr.vmem [resolvable:$true] %s3391
      %3397 = dma.vmem_to_hbm [thread:$0]  %s3392, 896, %s7, [#allocation4], 128, 128, 8
    $region45: #{tpu_custom_call.1} parent=1 // pred_fallthru
      _
    // Predicated region
    $region46: #{tpu_custom_call.1} parent=1 // pred_check
      _
    $region47: #{tpu_custom_call.1} parent=1 // pred_check_branch
      %3399 = sbr.rel (0) target = $region49
    $region48: #{tpu_custom_call.1} parent=1 // pred_region
      %3400 = dma.done [#allocation4], 896
    $region49: #{tpu_custom_call.1} parent=1 // pred_fallthru
      _
    %3401 = vsyncpa [#allocation3], 1
    %3402 = vsyncpa [#allocation6], 1
    %3403 = vsyncpa [#allocation4], 1

</llo_original>
